<compile_context>
chip_gen: v6e
topology: v6e:2x2x1
jax: 0.10.0
libtpu: 0.0.40
codegen_flags: <defaults>
</compile_context>

<pallas_src>
import functools

import jax
import jax.numpy as jnp
from jax.experimental import pallas as pl
from jax.experimental.pallas import tpu as pltpu


HSIZE = 2
REZ = 6
IN_DIM = (HSIZE + 1) * REZ   # 18
HIDDEN = 512
OUT_DIM = 1


def _round_up(n, m):
    return ((n + m - 1) // m) * m


def _tpu_kind():
    """Best-effort TPU generation string ('tpu v5 lite', 'tpu v6e', 'tpu7x', ...)."""
    try:
        dev = jax.devices()[0]
        if dev.platform == "tpu":
            return dev.device_kind.lower()
    except Exception:
        pass
    return ""


def _choose_tile_b(B, desired, min_steps):
    """Pick the batch tile.

    - multiple of 128 (8 for tiny batches) so x / out blocks stay tile-aligned,
    - as close to `desired` as possible to amortize per-grid-step overhead,
    - total padding bounded to < one granule per grid step,
    - at least `min_steps` grid steps (v7x: keep both TensorCores busy).
    """
    granule = 128 if B >= 128 else 8
    desired = max(granule, (desired // granule) * granule)
    n_steps = max(min_steps, pl.cdiv(B, desired))
    return max(granule, _round_up(pl.cdiv(B, n_steps), granule))


def _discrim_kernel(x_ref,
                    w1_ref, b1_ref,
                    w2_ref, b2_ref,
                    w3_ref, b3_ref,
                    w4_ref, b4_ref,
                    o_ref, *, apply_sigmoid):
    # Layer 1: (tile_b, 18) @ (18, 512), kept in f32 (K=18 -> negligible FLOPs,
    # preserves input precision), f32 accumulation.
    h = jnp.dot(x_ref[...], w1_ref[...], preferred_element_type=jnp.float32)
    h = jnp.maximum(h + b1_ref[...], 0.0)

    # Layer 2: (tile_b, 512) @ (512, 512), bf16 operands on the MXU, f32 accumulate.
    h = jnp.dot(h.astype(jnp.bfloat16), w2_ref[...],
                preferred_element_type=jnp.float32)
    h = jnp.maximum(h + b2_ref[...], 0.0)

    # Layer 3: (tile_b, 512) @ (512, 512), bf16 operands, f32 accumulate.
    h = jnp.dot(h.astype(jnp.bfloat16), w3_ref[...],
                preferred_element_type=jnp.float32)
    h = jnp.maximum(h + b3_ref[...], 0.0)

    # Layer 4 (512 -> 1): VPU multiply + lane reduction (avoids an N=1 MXU pass).
    y = jnp.sum(h * w4_ref[...], axis=-1, keepdims=True) + b4_ref[...]

    if apply_sigmoid:
        # exp already goes to the EUP; approx reciprocal moves the divide there
        # too (VPU slots freed, ~1e-4 abs error - negligible at sigmoid scale).
        y = pl.reciprocal(1.0 + jnp.exp(-y), approx=True)

    o_ref[...] = y.astype(o_ref.dtype)


def discrim_net_forward(himage, params, sigmoid=True, tile_b=1024):
    """himage: (B, hsize+1, rez) float32. Returns (B, 1) float32.

    Matches PyTorch: x = himage.view(-1, 18); x = dense(x); sigmoid optional.
    `params` are (w, b) pairs with w stored (in_features, out_features) so the
    kernel computes x @ W + b.
    """
    B = himage.shape[0]
    # Keep x in f32 (layer-1 precision); weight DMA dominates anyway and the
    # weights are resident, so x bytes are irrelevant.
    x = himage.reshape(B, IN_DIM).astype(jnp.float32)

    w1, b1, w2, b2, w3, b3, w4, b4 = params
    # bf16 weights for the two dominant 512x512 layers (cast once: halves their
    # DMA bytes and doubles MXU rate).  w1 stays f32 (tiny, preserves layer-1
    # precision).  Last-layer weight is laid out as a lane-dense (1, 512) row
    # for the VPU reduction.
    w1 = w1.astype(jnp.float32)
    w2 = w2.astype(jnp.bfloat16)
    w3 = w3.astype(jnp.bfloat16)
    w4_row = w4.astype(jnp.float32).reshape(1, HIDDEN)

    # Biases stay f32, shaped (1, N) for clean sublane broadcasting.
    b1 = b1.astype(jnp.float32).reshape(1, HIDDEN)
    b2 = b2.astype(jnp.float32).reshape(1, HIDDEN)
    b3 = b3.astype(jnp.float32).reshape(1, HIDDEN)
    b4 = b4.astype(jnp.float32).reshape(1, OUT_DIM)

    # Generation-aware batch tiling.
    kind = _tpu_kind()
    is_v7 = "v7" in kind or "tpu7" in kind
    min_steps = 2 if (is_v7 and B >= 256) else 1
    tile_b = _choose_tile_b(B, tile_b, min_steps)

    n_steps = pl.cdiv(B, tile_b)
    B_pad = n_steps * tile_b
    if B_pad != B:
        # Padded rows produce garbage outputs; they are sliced off below and
        # nothing in this kernel reduces over the batch.
        x = jnp.pad(x, ((0, B_pad - B), (0, 0)))

    grid = (n_steps,)

    # Weights/biases: same block index every grid step -> DMA'd once, resident.
    resident = lambda i: (0, 0)

    compiler_kwargs = dict(dimension_semantics=("parallel",))
    if tile_b > 1024:
        # Large tiles: f32 intermediates (tile_b x 512) press the scoped-VMEM
        # defaults (16 MiB v5e / 32 MiB v6e+v7x); raise the limit explicitly
        # (v7x only has 64 MiB physical, so stay well below that).
        compiler_kwargs["vmem_limit_bytes"] = (
            48 * 1024 * 1024 if is_v7 else 96 * 1024 * 1024)

    out = pl.pallas_call(
        functools.partial(_discrim_kernel, apply_sigmoid=sigmoid),
        out_shape=jax.ShapeDtypeStruct((B_pad, OUT_DIM), jnp.float32),
        grid=grid,
        in_specs=[
            pl.BlockSpec((tile_b, IN_DIM), lambda i: (i, 0)),   # x tile (f32)
            pl.BlockSpec((IN_DIM, HIDDEN), resident),           # w1 (f32)
            pl.BlockSpec((1, HIDDEN), resident),                # b1
            pl.BlockSpec((HIDDEN, HIDDEN), resident),           # w2 (bf16)
            pl.BlockSpec((1, HIDDEN), resident),                # b2
            pl.BlockSpec((HIDDEN, HIDDEN), resident),           # w3 (bf16)
            pl.BlockSpec((1, HIDDEN), resident),                # b3
            pl.BlockSpec((1, HIDDEN), resident),                # w4 row (f32)
            pl.BlockSpec((1, OUT_DIM), resident),               # b4
        ],
        out_specs=pl.BlockSpec((tile_b, OUT_DIM), lambda i: (i, 0)),
        compiler_params=pltpu.CompilerParams(**compiler_kwargs),
    )(x, w1, b1, w2, b2, w3, b3, w4_row, b4)

    return out[:B]


def init_params(key):
    """Deterministic init matching PyTorch nn.Linear default:
    uniform(-1/sqrt(fan_in), 1/sqrt(fan_in)) for both weight and bias.
    Weights stored (in_features, out_features) so the kernel computes x @ W + b."""
    dims = [(IN_DIM, HIDDEN), (HIDDEN, HIDDEN), (HIDDEN, HIDDEN), (HIDDEN, OUT_DIM)]
    params = []
    for (fan_in, fan_out) in dims:
        key, kw, kb = jax.random.split(key, 3)
        bound = 1.0 / jnp.sqrt(float(fan_in))
        w = jax.random.uniform(kw, (fan_in, fan_out), jnp.float32, -bound, bound)
        b = jax.random.uniform(kb, (fan_out,), jnp.float32, -bound, bound)
        params.extend([w, b])
    return tuple(params)


def _reference_f32(himage, params, sigmoid):
    """Pure-f32 JAX reference of the PyTorch forward pass."""
    w1, b1, w2, b2, w3, b3, w4, b4 = params
    x = himage.reshape(himage.shape[0], IN_DIM).astype(jnp.float32)
    h = jnp.maximum(x @ w1 + b1, 0.0)
    h = jnp.maximum(h @ w2 + b2, 0.0)
    h = jnp.maximum(h @ w3 + b3, 0.0)
    y = h @ w4 + b4
    return jax.nn.sigmoid(y) if sigmoid else y


if __name__ == "__main__":
    key = jax.random.PRNGKey(0)
    key, k_in = jax.random.split(key)

    B = 8
    himage = jax.random.normal(k_in, (B, HSIZE + 1, REZ), dtype=jnp.float32)
    params = init_params(key)

    # sigmoid=True path.
    out = jax.block_until_ready(discrim_net_forward(himage, params, sigmoid=True))
    assert out.shape == (B, 1), out.shape
    # approx reciprocal may overshoot by ~1e-4 near saturation -> small slack.
    assert bool(jnp.all((out >= -1e-3) & (out <= 1.0 + 1e-3)))

    # Compare against the pure-f32 reference (kernel uses bf16 weights for the
    # two 512x512 layers + an approx reciprocal -> a few e-3 worst case).
    ref_sig = _reference_f32(himage, params, sigmoid=True)
    assert bool(jnp.allclose(out, ref_sig, atol=2e-2)), \
        float(jnp.max(jnp.abs(out - ref_sig)))

    # sigmoid=False path.
    out_logits = jax.block_until_ready(
        discrim_net_forward(himage, params, sigmoid=False))
    ref_logits = _reference_f32(himage, params, sigmoid=False)
    assert out_logits.shape == (B, 1)
    assert bool(jnp.allclose(out_logits, ref_logits, atol=2e-2)), \
        float(jnp.max(jnp.abs(out_logits - ref_logits)))

    # Ragged batch (exercises the padding path: B=5 -> tile 8, 3 pad rows).
    him2 = himage[:5]
    out2 = jax.block_until_ready(discrim_net_forward(him2, params, sigmoid=True))
    ref2 = _reference_f32(him2, params, sigmoid=True)
    assert out2.shape == (5, 1)
    assert bool(jnp.allclose(out2, ref2, atol=2e-2))

    print("KERNEL_OK")
</pallas_src>

<mosaic_0001>
module attributes {stable_mosaic.version = 11 : i64} {
  func.func @_discrim_kernel(%arg0: i32, %arg1: memref<8x18xf32, #tpu.memory_space<vmem>>, %arg2: memref<18x512xf32, #tpu.memory_space<vmem>>, %arg3: memref<1x512xf32, #tpu.memory_space<vmem>>, %arg4: memref<512x512xbf16, #tpu.memory_space<vmem>>, %arg5: memref<1x512xf32, #tpu.memory_space<vmem>>, %arg6: memref<512x512xbf16, #tpu.memory_space<vmem>>, %arg7: memref<1x512xf32, #tpu.memory_space<vmem>>, %arg8: memref<1x512xf32, #tpu.memory_space<vmem>>, %arg9: memref<1x1xf32, #tpu.memory_space<vmem>>, %arg10: memref<8x1xf32, #tpu.memory_space<vmem>>) attributes {dimension_semantics = [#tpu.dimension_semantics<parallel>], iteration_bounds = array<i64: 1>, scalar_prefetch = 0 : i64, scratch_operands = 0 : i64, tpu.core_type = #tpu.core_type<tc>, window_params = [{transform_indices = @transform_0, window_bounds = array<i64: 8, 18>}, {pipeline_mode = #tpu.pipeline_mode<synchronous>, transform_indices = @transform_1, window_bounds = array<i64: 18, 512>}, {pipeline_mode = #tpu.pipeline_mode<synchronous>, transform_indices = @transform_2, window_bounds = array<i64: 1, 512>}, {pipeline_mode = #tpu.pipeline_mode<synchronous>, transform_indices = @transform_3, window_bounds = array<i64: 512, 512>}, {pipeline_mode = #tpu.pipeline_mode<synchronous>, transform_indices = @transform_4, window_bounds = array<i64: 1, 512>}, {pipeline_mode = #tpu.pipeline_mode<synchronous>, transform_indices = @transform_5, window_bounds = array<i64: 512, 512>}, {pipeline_mode = #tpu.pipeline_mode<synchronous>, transform_indices = @transform_6, window_bounds = array<i64: 1, 512>}, {pipeline_mode = #tpu.pipeline_mode<synchronous>, transform_indices = @transform_7, window_bounds = array<i64: 1, 512>}, {pipeline_mode = #tpu.pipeline_mode<synchronous>, transform_indices = @transform_8, window_bounds = array<i64: 1, 1>}, {transform_indices = @transform_9, window_bounds = array<i64: 8, 1>}]} {
    %c0 = arith.constant 0 : index
    %c0_0 = arith.constant 0 : index
    %0 = vector.load %arg1[%c0, %c0_0] : memref<8x18xf32, #tpu.memory_space<vmem>>, vector<8x18xf32>
    %c0_1 = arith.constant 0 : index
    %c0_2 = arith.constant 0 : index
    %1 = vector.load %arg2[%c0_1, %c0_2] : memref<18x512xf32, #tpu.memory_space<vmem>>, vector<18x512xf32>
    %cst = arith.constant dense<0.000000e+00> : vector<8x512xf32>
    %2 = tpu.matmul %0, %1, %cst {dimension_numbers = #tpu.dot_dimension_numbers<[1], [0], [0], [1], [0, 0, 1, 1], [], []>} : vector<8x18xf32>, vector<18x512xf32>, vector<8x512xf32> -> vector<8x512xf32>
    %c0_3 = arith.constant 0 : index
    %c0_4 = arith.constant 0 : index
    %3 = vector.load %arg3[%c0_3, %c0_4] : memref<1x512xf32, #tpu.memory_space<vmem>>, vector<1x512xf32>
    %4 = vector.broadcast %3 : vector<1x512xf32> to vector<8x512xf32>
    %5 = arith.addf %2, %4 : vector<8x512xf32>
    %cst_5 = arith.constant 0.000000e+00 : f32
    %6 = vector.broadcast %cst_5 : f32 to vector<8x512xf32>
    %7 = arith.maximumf %5, %6 : vector<8x512xf32>
    %8 = arith.truncf %7 : vector<8x512xf32> to vector<8x512xbf16>
    %c0_6 = arith.constant 0 : index
    %c0_7 = arith.constant 0 : index
    %9 = vector.load %arg4[%c0_6, %c0_7] : memref<512x512xbf16, #tpu.memory_space<vmem>>, vector<512x512xbf16>
    %cst_8 = arith.constant dense<0.000000e+00> : vector<8x512xf32>
    %10 = tpu.matmul %8, %9, %cst_8 {dimension_numbers = #tpu.dot_dimension_numbers<[1], [0], [0], [1], [0, 0, 1, 1], [], []>} : vector<8x512xbf16>, vector<512x512xbf16>, vector<8x512xf32> -> vector<8x512xf32>
    %c0_9 = arith.constant 0 : index
    %c0_10 = arith.constant 0 : index
    %11 = vector.load %arg5[%c0_9, %c0_10] : memref<1x512xf32, #tpu.memory_space<vmem>>, vector<1x512xf32>
    %12 = vector.broadcast %11 : vector<1x512xf32> to vector<8x512xf32>
    %13 = arith.addf %10, %12 : vector<8x512xf32>
    %cst_11 = arith.constant 0.000000e+00 : f32
    %14 = vector.broadcast %cst_11 : f32 to vector<8x512xf32>
    %15 = arith.maximumf %13, %14 : vector<8x512xf32>
    %16 = arith.truncf %15 : vector<8x512xf32> to vector<8x512xbf16>
    %c0_12 = arith.constant 0 : index
    %c0_13 = arith.constant 0 : index
    %17 = vector.load %arg6[%c0_12, %c0_13] : memref<512x512xbf16, #tpu.memory_space<vmem>>, vector<512x512xbf16>
    %cst_14 = arith.constant dense<0.000000e+00> : vector<8x512xf32>
    %18 = tpu.matmul %16, %17, %cst_14 {dimension_numbers = #tpu.dot_dimension_numbers<[1], [0], [0], [1], [0, 0, 1, 1], [], []>} : vector<8x512xbf16>, vector<512x512xbf16>, vector<8x512xf32> -> vector<8x512xf32>
    %c0_15 = arith.constant 0 : index
    %c0_16 = arith.constant 0 : index
    %19 = vector.load %arg7[%c0_15, %c0_16] : memref<1x512xf32, #tpu.memory_space<vmem>>, vector<1x512xf32>
    %20 = vector.broadcast %19 : vector<1x512xf32> to vector<8x512xf32>
    %21 = arith.addf %18, %20 : vector<8x512xf32>
    %cst_17 = arith.constant 0.000000e+00 : f32
    %22 = vector.broadcast %cst_17 : f32 to vector<8x512xf32>
    %23 = arith.maximumf %21, %22 : vector<8x512xf32>
    %c0_18 = arith.constant 0 : index
    %c0_19 = arith.constant 0 : index
    %24 = vector.load %arg8[%c0_18, %c0_19] : memref<1x512xf32, #tpu.memory_space<vmem>>, vector<1x512xf32>
    %25 = vector.broadcast %24 : vector<1x512xf32> to vector<8x512xf32>
    %26 = arith.mulf %23, %25 : vector<8x512xf32>
    %cst_20 = arith.constant dense<0.000000e+00> : vector<8xf32>
    %27 = vector.multi_reduction <add>, %26, %cst_20 [1] : vector<8x512xf32> to vector<8xf32>
    %28 = vector.shape_cast %27 : vector<8xf32> to vector<8x1xf32>
    %c0_21 = arith.constant 0 : index
    %c0_22 = arith.constant 0 : index
    %29 = vector.load %arg9[%c0_21, %c0_22] : memref<1x1xf32, #tpu.memory_space<vmem>>, vector<1x1xf32>
    %30 = vector.broadcast %29 : vector<1x1xf32> to vector<8x1xf32>
    %31 = arith.addf %28, %30 : vector<8x1xf32>
    %cst_23 = arith.constant 0.000000e+00 : f32
    %32 = vector.broadcast %cst_23 : f32 to vector<8x1xf32>
    %33 = arith.subf %32, %31 : vector<8x1xf32>
    %34 = math.exp %33 : vector<8x1xf32>
    %cst_24 = arith.constant 1.000000e+00 : f32
    %35 = vector.broadcast %cst_24 : f32 to vector<8x1xf32>
    %36 = arith.addf %35, %34 : vector<8x1xf32>
    %37 = tpu.reciprocal %36 {approx = true} : vector<8x1xf32> -> vector<8x1xf32>
    %c0_25 = arith.constant 0 : index
    %c0_26 = arith.constant 0 : index
    %38 = vector.load %arg10[%c0_25, %c0_26] : memref<8x1xf32, #tpu.memory_space<vmem>>, vector<8x1xf32>
    tpu.vector_store %arg10[%c0_25, %c0_26], %37 {strides = array<i32>} : memref<8x1xf32, #tpu.memory_space<vmem>>, vector<8x1xf32>,
    return
  }
  func.func @transform_0(%arg0: i32) -> (i32, i32) {
    %c0_i32 = arith.constant 0 : i32
    %c0_i32_0 = arith.constant 0 : i32
    return %arg0, %c0_i32 : i32, i32
  }
  func.func @transform_1(%arg0: i32) -> (i32, i32) {
    %c0_i32 = arith.constant 0 : i32
    %c0_i32_0 = arith.constant 0 : i32
    %c0_i32_1 = arith.constant 0 : i32
    return %c0_i32, %c0_i32_0 : i32, i32
  }
  func.func @transform_2(%arg0: i32) -> (i32, i32) {
    %c0_i32 = arith.constant 0 : i32
    %c0_i32_0 = arith.constant 0 : i32
    %c0_i32_1 = arith.constant 0 : i32
    return %c0_i32, %c0_i32_0 : i32, i32
  }
  func.func @transform_3(%arg0: i32) -> (i32, i32) {
    %c0_i32 = arith.constant 0 : i32
    %c0_i32_0 = arith.constant 0 : i32
    %c0_i32_1 = arith.constant 0 : i32
    return %c0_i32, %c0_i32_0 : i32, i32
  }
  func.func @transform_4(%arg0: i32) -> (i32, i32) {
    %c0_i32 = arith.constant 0 : i32
    %c0_i32_0 = arith.constant 0 : i32
    %c0_i32_1 = arith.constant 0 : i32
    return %c0_i32, %c0_i32_0 : i32, i32
  }
  func.func @transform_5(%arg0: i32) -> (i32, i32) {
    %c0_i32 = arith.constant 0 : i32
    %c0_i32_0 = arith.constant 0 : i32
    %c0_i32_1 = arith.constant 0 : i32
    return %c0_i32, %c0_i32_0 : i32, i32
  }
  func.func @transform_6(%arg0: i32) -> (i32, i32) {
    %c0_i32 = arith.constant 0 : i32
    %c0_i32_0 = arith.constant 0 : i32
    %c0_i32_1 = arith.constant 0 : i32
    return %c0_i32, %c0_i32_0 : i32, i32
  }
  func.func @transform_7(%arg0: i32) -> (i32, i32) {
    %c0_i32 = arith.constant 0 : i32
    %c0_i32_0 = arith.constant 0 : i32
    %c0_i32_1 = arith.constant 0 : i32
    return %c0_i32, %c0_i32_0 : i32, i32
  }
  func.func @transform_8(%arg0: i32) -> (i32, i32) {
    %c0_i32 = arith.constant 0 : i32
    %c0_i32_0 = arith.constant 0 : i32
    %c0_i32_1 = arith.constant 0 : i32
    return %c0_i32, %c0_i32_0 : i32, i32
  }
  func.func @transform_9(%arg0: i32) -> (i32, i32) {
    %c0_i32 = arith.constant 0 : i32
    %c0_i32_0 = arith.constant 0 : i32
    return %arg0, %c0_i32 : i32, i32
  }
}

</mosaic_0001>

<llo_original>
// kernel: tpu_custom_call.1
$region0: #{tpu_custom_call.1}
  #allocation0 [shape = 'u32[]', space=smem, size = 0x4, offset = 0x4, fixed_abs, tag = 'smem constant byte address 0x4 - core index']
  #allocation1 [shape = 'u32[144,128]{1,0:T(1,128)}', space=vmem, size = 0x12000, scoped, tag = 'internal scratch']
  #allocation2 [shape = 'f32[1,1]{1,0:T(1,128)S(1)}', space=vmem, size = 0x200, scoped, tag = 'scoped memory for tpu_custom_call.1']
  %s0 = inlined_call_operand.hbm [shape: f32[8,18], index: 0, kind: input, shape index: {}]
  %s1 = inlined_call_operand.hbm [shape: f32[18,512], index: 1, kind: input, shape index: {}]
  %s2 = inlined_call_operand.vmem [shape: f32[1,512], index: 2, kind: input, shape index: {}]
  %s3 = inlined_call_operand.hbm [shape: bf16[512,512], index: 3, kind: input, shape index: {}]
  %s4 = inlined_call_operand.vmem [shape: f32[1,512], index: 4, kind: input, shape index: {}]
  %s5 = inlined_call_operand.hbm [shape: bf16[512,512], index: 5, kind: input, shape index: {}]
  %s6 = inlined_call_operand.vmem [shape: f32[1,512], index: 6, kind: input, shape index: {}]
  %s7 = inlined_call_operand.hbm [shape: f32[1,512], index: 7, kind: input, shape index: {}]
  %s8 = inlined_call_operand.<no memory space> [shape: f32[1,1], index: 8, kind: input, shape index: {}]
  %s9 = inlined_call_operand.vmem [shape: f32[8,1], index: 9, kind: output, shape index: {}]
  %s10 = sld [smem:[#allocation0]]
  $region66: #{tpu_custom_call.1} parent=0
    _
  %s12 = ssub.s32 1, %s10
  %s13 = scalar_select 0, %s12, %s10
  %v14 = vstv %s8
  %15 = vst [vmem:[#allocation2] sm:$0x1] %v14
  $region1: #{tpu_custom_call.1} parent=0
    #allocation3 [shape = 'u8[4096]{0}', space=vmem, size = 0x1000, scoped, tag = 'input window, operand 0, single buffered']
    #allocation4 [shape = 's32[1]{0}', space=sflag, size = 0x4, scoped, tag = 'scoped memory for tpu_custom_call.1']
    #allocation5 [shape = 'u8[49152]{0}', space=vmem, size = 0xc000, scoped, tag = 'input window, operand 1, single buffered']
    #allocation6 [shape = 's32[1]{0}', space=sflag, size = 0x4, scoped, tag = 'scoped memory for tpu_custom_call.1']
    #allocation7 [shape = 'u8[524288]{0}', space=vmem, size = 0x80000, scoped, tag = 'input window, operand 3, single buffered']
    #allocation8 [shape = 'u8[524288]{0}', space=vmem, size = 0x80000, scoped, tag = 'input window, operand 5, single buffered']
    #allocation9 [shape = 's32[1]{0}', space=sflag, size = 0x4, scoped, tag = 'scoped memory for tpu_custom_call.1']
    #allocation10 [shape = 'u8[2048]{0}', space=vmem, size = 0x800, scoped, tag = 'input window, operand 7, single buffered']
    %16 = vsyncpa [#allocation4], 0
    %17 = vsyncpa [#allocation6], 0
    %18 = vsyncpa [#allocation9], 0
    // Predicated region
    $region2: #{tpu_custom_call.1} parent=1 // pred_check
      _
    $region3: #{tpu_custom_call.1} parent=1 // pred_check_branch
      %20 = sbr.rel (0) target = $region5
    $region4: #{tpu_custom_call.1} parent=1 // pred_region
      %s22 = ssub.s32 128, 128
      %23 = vsyncadd [#allocation4], %s22
      %s25 = sshll.u32 [#allocation3], 4
      %s26 = int_to_ptr.vmem [resolvable:$true] %s25
      %28 = dma.hbm_to_vmem [thread:$0]  %s0, 128, %s26, [#allocation4]
    $region5: #{tpu_custom_call.1} parent=1 // pred_fallthru
      _
    // Predicated region
    $region6: #{tpu_custom_call.1} parent=1 // pred_check
      _
    $region7: #{tpu_custom_call.1} parent=1 // pred_check_branch
      %30 = sbr.rel (0) target = $region9
    $region8: #{tpu_custom_call.1} parent=1 // pred_region
      %s32 = ssub.s32 1536, 1536
      %33 = vsyncadd [#allocation6], %s32
      %s34 = sshll.u32 [#allocation5], 4
      %s35 = int_to_ptr.vmem [resolvable:$true] %s34
      %40 = dma.hbm_to_vmem [thread:$0]  %s1, 1536, %s35, [#allocation6], 512, 512, 32
    $region9: #{tpu_custom_call.1} parent=1 // pred_fallthru
      _
    // Predicated region
    $region10: #{tpu_custom_call.1} parent=1 // pred_check
      _
    $region11: #{tpu_custom_call.1} parent=1 // pred_check_branch
      %42 = sbr.rel (0) target = $region13
    $region12: #{tpu_custom_call.1} parent=1 // pred_region
      _
    $region13: #{tpu_custom_call.1} parent=1 // pred_fallthru
      _
    // Predicated region
    $region14: #{tpu_custom_call.1} parent=1 // pred_check
      _
    $region15: #{tpu_custom_call.1} parent=1 // pred_check_branch
      %44 = sbr.rel (0) target = $region17
    $region16: #{tpu_custom_call.1} parent=1 // pred_region
      %s46 = ssub.s32 16384, 16384
      %47 = vsyncadd [#allocation6], %s46
      %s48 = sshll.u32 [#allocation7], 4
      %s49 = int_to_ptr.vmem [resolvable:$true] %s48
      %54 = dma.hbm_to_vmem [thread:$0]  %s3, 16384, %s49, [#allocation6], 256, 256, 16
    $region17: #{tpu_custom_call.1} parent=1 // pred_fallthru
      _
    // Predicated region
    $region18: #{tpu_custom_call.1} parent=1 // pred_check
      _
    $region19: #{tpu_custom_call.1} parent=1 // pred_check_branch
      %56 = sbr.rel (0) target = $region21
    $region20: #{tpu_custom_call.1} parent=1 // pred_region
      _
    $region21: #{tpu_custom_call.1} parent=1 // pred_fallthru
      _
    // Predicated region
    $region22: #{tpu_custom_call.1} parent=1 // pred_check
      _
    $region23: #{tpu_custom_call.1} parent=1 // pred_check_branch
      %58 = sbr.rel (0) target = $region25
    $region24: #{tpu_custom_call.1} parent=1 // pred_region
      %s60 = ssub.s32 16384, 16384
      %61 = vsyncadd [#allocation9], %s60
      %s62 = sshll.u32 [#allocation8], 4
      %s63 = int_to_ptr.vmem [resolvable:$true] %s62
      %68 = dma.hbm_to_vmem [thread:$0]  %s5, 16384, %s63, [#allocation9], 256, 256, 16
    $region25: #{tpu_custom_call.1} parent=1 // pred_fallthru
      _
    // Predicated region
    $region26: #{tpu_custom_call.1} parent=1 // pred_check
      _
    $region27: #{tpu_custom_call.1} parent=1 // pred_check_branch
      %70 = sbr.rel (0) target = $region29
    $region28: #{tpu_custom_call.1} parent=1 // pred_region
      _
    $region29: #{tpu_custom_call.1} parent=1 // pred_fallthru
      _
    // Predicated region
    $region30: #{tpu_custom_call.1} parent=1 // pred_check
      _
    $region31: #{tpu_custom_call.1} parent=1 // pred_check_branch
      %72 = sbr.rel (0) target = $region33
    $region32: #{tpu_custom_call.1} parent=1 // pred_region
      %s74 = ssub.s32 64, 64
      %75 = vsyncadd [#allocation9], %s74
      %s77 = sshll.u32 [#allocation10], 4
      %s78 = int_to_ptr.vmem [resolvable:$true] %s77
      %80 = dma.hbm_to_vmem [thread:$0]  %s7, 64, %s78, [#allocation9]
    $region33: #{tpu_custom_call.1} parent=1 // pred_fallthru
      _
    // Predicated region
    $region34: #{tpu_custom_call.1} parent=1 // pred_check
      _
    $region35: #{tpu_custom_call.1} parent=1 // pred_check_branch
      %82 = sbr.rel (0) target = $region37
    $region36: #{tpu_custom_call.1} parent=1 // pred_region
      _
    $region37: #{tpu_custom_call.1} parent=1 // pred_fallthru
      _
    // Predicated region
    $region38: #{tpu_custom_call.1} parent=1 // pred_check
      _
    $region39: #{tpu_custom_call.1} parent=1 // pred_check_branch
      %84 = sbr.rel (0) target = $region41
    $region40: #{tpu_custom_call.1} parent=1 // pred_region
      %85 = dma.done [#allocation4], 128
    $region41: #{tpu_custom_call.1} parent=1 // pred_fallthru
      _
    // Predicated region
    $region42: #{tpu_custom_call.1} parent=1 // pred_check
      _
    $region43: #{tpu_custom_call.1} parent=1 // pred_check_branch
      %87 = sbr.rel (0) target = $region45
    $region44: #{tpu_custom_call.1} parent=1 // pred_region
      %88 = dma.done [#allocation6], 1536
    $region45: #{tpu_custom_call.1} parent=1 // pred_fallthru
      _
    // Predicated region
    $region46: #{tpu_custom_call.1} parent=1 // pred_check
      _
    $region47: #{tpu_custom_call.1} parent=1 // pred_check_branch
      %90 = sbr.rel (0) target = $region49
    $region48: #{tpu_custom_call.1} parent=1 // pred_region
      %91 = dma.done [#allocation6], 16384
    $region49: #{tpu_custom_call.1} parent=1 // pred_fallthru
      _
    // Predicated region
    $region50: #{tpu_custom_call.1} parent=1 // pred_check
      _
    $region51: #{tpu_custom_call.1} parent=1 // pred_check_branch
      %93 = sbr.rel (0) target = $region53
    $region52: #{tpu_custom_call.1} parent=1 // pred_region
      %94 = dma.done [#allocation9], 16384
    $region53: #{tpu_custom_call.1} parent=1 // pred_fallthru
      _
    // Predicated region
    $region54: #{tpu_custom_call.1} parent=1 // pred_check
      _
    $region55: #{tpu_custom_call.1} parent=1 // pred_check_branch
      %96 = sbr.rel (0) target = $region57
    $region56: #{tpu_custom_call.1} parent=1 // pred_region
      %97 = dma.done [#allocation9], 64
    $region57: #{tpu_custom_call.1} parent=1 // pred_fallthru
      _
    %v98 = vld [vmem:[#allocation3] sm:$0xff]
    %v99 = vld [vmem:[#allocation5] sm:$0xff]
    %v100 = vld [vmem:[#allocation5 + $0x8] sm:$0xff]
    %v101 = vld [vmem:[#allocation5 + $0x10] sm:$0xff]
    %v102 = vld [vmem:[#allocation5 + $0x18] sm:$0xff]
    %v103 = vld [vmem:[#allocation5 + $0x20] sm:$0xff]
    %v104 = vld [vmem:[#allocation5 + $0x28] sm:$0xff]
    %v105 = vld [vmem:[#allocation5 + $0x30] sm:$0xff]
    %v106 = vld [vmem:[#allocation5 + $0x38] sm:$0xff]
    %v107 = vld [vmem:[#allocation5 + $0x40] sm:$0x3]
    %v108 = vld [vmem:[#allocation5 + $0x48] sm:$0x3]
    %v109 = vld [vmem:[#allocation5 + $0x50] sm:$0x3]
    %v110 = vld [vmem:[#allocation5 + $0x58] sm:$0x3]
    %v111 = vld [vmem:[%s2] sm:$0xf]
    %v113 = vlaneseq
    %v114 = vshrl.u32 %v113, 7
    %v115 = vsub.s32 0, %v114
    %v116 = vrot.slane %v111, %v115
    %v117 = vlaneseq
    %v118 = vshrl.u32 %v117, 7
    %v119 = vsub.s32 1, %v118
    %v120 = vrot.slane %v111, %v119
    %v121 = vlaneseq
    %v122 = vshrl.u32 %v121, 7
    %v123 = vsub.s32 2, %v122
    %v124 = vrot.slane %v111, %v123
    %v125 = vlaneseq
    %v126 = vshrl.u32 %v125, 7
    %v127 = vsub.s32 3, %v126
    %v128 = vrot.slane %v111, %v127
    %vm133 = vcmask 146432
    %v135 = vsel %vm133, %v98, 0
    %vm137 = vcmask 1041408
    %v139 = vsel %vm137, %v107, 0
    %v142 = vsel %vm137, %v108, 0
    %v145 = vsel %vm137, %v109, 0
    %v148 = vsel %vm137, %v110, 0
    %150 = vmatprep.subr.mxu0 0.0
    %151 = vmatpush1.msra.mxu0 0.0
    %152 = vmatprep.subr.mxu0 0.0
    %153 = vmatpush1.msra.mxu0 0.0
    %154 = vmatprep.subr.mxu0 0.0
    %155 = vmatpush1.msra.mxu0 0.0
    %156 = vmatprep.subr.mxu0 0.0
    %157 = vmatpush1.msra.mxu0 0.0
    %158 = vmatprep.subr.mxu0 0.0
    %159 = vmatpush1.msra.mxu0 0.0
    %160 = vmatprep.subr.mxu0 0.0
    %161 = vmatpush1.msra.mxu0 0.0
    %162 = vmatprep.subr.mxu0 0.0
    %163 = vmatpush1.msra.mxu0 0.0
    %164 = vmatprep.subr.mxu0 0.0
    %165 = vmatpush1.msra.mxu0 0.0
    %166 = vmatprep.subr.mxu0 0.0
    %167 = vmatpush1.msra.mxu0 0.0
    %168 = vmatprep.subr.mxu0 0.0
    %169 = vmatpush1.msra.mxu0 0.0
    %170 = vmatprep.subr.mxu0 0.0
    %171 = vmatpush1.msra.mxu0 0.0
    %172 = vmatprep.subr.mxu0 0.0
    %173 = vmatpush1.msra.mxu0 0.0
    %174 = vmatprep.subr.mxu0 0.0
    %175 = vmatpush1.msra.mxu0 0.0
    %176 = vmatprep.subr.mxu0 %v142
    %177 = vmatpush1.msra.mxu0 %v139
    %178 = vmatprep.subr.mxu0 %v104
    %179 = vmatpush1.msra.mxu0 %v103
    %180 = vmatprep.subr.mxu0 %v100
    %181 = vmatpush1.msra.mxu0 %v99
    %182 = vmatprep.subr.mxu0 0.0
    %183 = vmatpush2.msra.mxu0 0.0
    %184 = vmatprep.subr.mxu0 0.0
    %185 = vmatpush2.msra.mxu0 0.0
    %186 = vmatprep.subr.mxu0 0.0
    %187 = vmatpush2.msra.mxu0 0.0
    %188 = vmatprep.subr.mxu0 0.0
    %189 = vmatpush2.msra.mxu0 0.0
    %190 = vmatprep.subr.mxu0 0.0
    %191 = vmatpush2.msra.mxu0 0.0
    %192 = vmatprep.subr.mxu0 0.0
    %193 = vmatpush2.msra.mxu0 0.0
    %194 = vmatprep.subr.mxu0 0.0
    %195 = vmatpush2.msra.mxu0 0.0
    %196 = vmatprep.subr.mxu0 0.0
    %197 = vmatpush2.msra.mxu0 0.0
    %198 = vmatprep.subr.mxu0 0.0
    %199 = vmatpush2.msra.mxu0 0.0
    %200 = vmatprep.subr.mxu0 0.0
    %201 = vmatpush2.msra.mxu0 0.0
    %202 = vmatprep.subr.mxu0 0.0
    %203 = vmatpush2.msra.mxu0 0.0
    %204 = vmatprep.subr.mxu0 0.0
    %205 = vmatpush2.msra.mxu0 0.0
    %206 = vmatprep.subr.mxu0 0.0
    %207 = vmatpush2.msra.mxu0 0.0
    %208 = vmatprep.subr.mxu0 0.0
    %209 = vmatpush2.msra.mxu0 0.0
    %210 = vmatprep.subr.mxu0 0.0
    %211 = vmatpush2.msra.mxu0 0.0
    %212 = vmatprep.subr.mxu0 0.0
    %213 = vmatpush2.msra.mxu0 0.0
    %214 = vmatprep.mubr.f32.mxu0 0.0
    %215 = vmatmul.mubr.f32.gmra.mxu0 %v135
    %v216 = vpop.f32.mrf.mxu0
    %v217 = vadd.f32 %v116, %v216
    %v218 = vpop.f32.mrf.mxu0
    %v219 = vadd.f32 %v120, %v218
    %220 = vdwg.mxu0
    %221 = vmatprep.subr.mxu0 0.0
    %222 = vmatpush1.msra.mxu0 0.0
    %223 = vmatprep.subr.mxu0 0.0
    %224 = vmatpush1.msra.mxu0 0.0
    %225 = vmatprep.subr.mxu0 0.0
    %226 = vmatpush1.msra.mxu0 0.0
    %227 = vmatprep.subr.mxu0 0.0
    %228 = vmatpush1.msra.mxu0 0.0
    %229 = vmatprep.subr.mxu0 0.0
    %230 = vmatpush1.msra.mxu0 0.0
    %231 = vmatprep.subr.mxu0 0.0
    %232 = vmatpush1.msra.mxu0 0.0
    %233 = vmatprep.subr.mxu0 0.0
    %234 = vmatpush1.msra.mxu0 0.0
    %235 = vmatprep.subr.mxu0 0.0
    %236 = vmatpush1.msra.mxu0 0.0
    %237 = vmatprep.subr.mxu0 0.0
    %238 = vmatpush1.msra.mxu0 0.0
    %239 = vmatprep.subr.mxu0 0.0
    %240 = vmatpush1.msra.mxu0 0.0
    %241 = vmatprep.subr.mxu0 0.0
    %242 = vmatpush1.msra.mxu0 0.0
    %243 = vmatprep.subr.mxu0 0.0
    %244 = vmatpush1.msra.mxu0 0.0
    %245 = vmatprep.subr.mxu0 0.0
    %246 = vmatpush1.msra.mxu0 0.0
    %247 = vmatprep.subr.mxu0 %v148
    %248 = vmatpush1.msra.mxu0 %v145
    %249 = vmatprep.subr.mxu0 %v106
    %250 = vmatpush1.msra.mxu0 %v105
    %251 = vmatprep.subr.mxu0 %v102
    %252 = vmatpush1.msra.mxu0 %v101
    %253 = vmatprep.subr.mxu0 0.0
    %254 = vmatpush2.msra.mxu0 0.0
    %255 = vmatprep.subr.mxu0 0.0
    %256 = vmatpush2.msra.mxu0 0.0
    %257 = vmatprep.subr.mxu0 0.0
    %258 = vmatpush2.msra.mxu0 0.0
    %259 = vmatprep.subr.mxu0 0.0
    %260 = vmatpush2.msra.mxu0 0.0
    %261 = vmatprep.subr.mxu0 0.0
    %262 = vmatpush2.msra.mxu0 0.0
    %263 = vmatprep.subr.mxu0 0.0
    %264 = vmatpush2.msra.mxu0 0.0
    %265 = vmatprep.subr.mxu0 0.0
    %266 = vmatpush2.msra.mxu0 0.0
    %267 = vmatprep.subr.mxu0 0.0
    %268 = vmatpush2.msra.mxu0 0.0
    %269 = vmatprep.subr.mxu0 0.0
    %270 = vmatpush2.msra.mxu0 0.0
    %271 = vmatprep.subr.mxu0 0.0
    %272 = vmatpush2.msra.mxu0 0.0
    %273 = vmatprep.subr.mxu0 0.0
    %274 = vmatpush2.msra.mxu0 0.0
    %275 = vmatprep.subr.mxu0 0.0
    %276 = vmatpush2.msra.mxu0 0.0
    %277 = vmatprep.subr.mxu0 0.0
    %278 = vmatpush2.msra.mxu0 0.0
    %279 = vmatprep.subr.mxu0 0.0
    %280 = vmatpush2.msra.mxu0 0.0
    %281 = vmatprep.subr.mxu0 0.0
    %282 = vmatpush2.msra.mxu0 0.0
    %283 = vmatprep.subr.mxu0 0.0
    %284 = vmatpush2.msra.mxu0 0.0
    %285 = vmatprep.mubr.f32.mxu0 0.0
    %286 = vmatmul.mubr.f32.gmra.mxu0 %v135
    %v287 = vpop.f32.mrf.mxu0
    %v288 = vadd.f32 %v124, %v287
    %v289 = vpop.f32.mrf.mxu0
    %v290 = vadd.f32 %v128, %v289
    %291 = vdwg.mxu0
    %v292 = vmax.f32 %v217, 0.0
    %v293 = vmax.f32 %v219, 0.0
    %v294 = vmax.f32 %v288, 0.0
    %v295 = vmax.f32 %v290, 0.0
    %v296 = vpack.c.bf16 %v292, %v292
    %v297 = vpack.c.bf16 %v293, %v293
    %v298 = vpack.c.bf16 %v294, %v294
    %v299 = vpack.c.bf16 %v295, %v295
    %v300 = vld [vmem:[#allocation7] sm:$0xff]
    %v301 = vld [vmem:[#allocation7 + $0x8] sm:$0xff]
    %v302 = vld [vmem:[#allocation7 + $0x10] sm:$0xff]
    %v303 = vld [vmem:[#allocation7 + $0x18] sm:$0xff]
    %v304 = vld [vmem:[#allocation7 + $0x20] sm:$0xff]
    %v305 = vld [vmem:[#allocation7 + $0x28] sm:$0xff]
    %v306 = vld [vmem:[#allocation7 + $0x30] sm:$0xff]
    %v307 = vld [vmem:[#allocation7 + $0x38] sm:$0xff]
    %v308 = vld [vmem:[#allocation7 + $0x40] sm:$0xff]
    %v309 = vld [vmem:[#allocation7 + $0x48] sm:$0xff]
    %v310 = vld [vmem:[#allocation7 + $0x50] sm:$0xff]
    %v311 = vld [vmem:[#allocation7 + $0x58] sm:$0xff]
    %v312 = vld [vmem:[#allocation7 + $0x60] sm:$0xff]
    %v313 = vld [vmem:[#allocation7 + $0x68] sm:$0xff]
    %v314 = vld [vmem:[#allocation7 + $0x70] sm:$0xff]
    %v315 = vld [vmem:[#allocation7 + $0x78] sm:$0xff]
    %v316 = vld [vmem:[#allocation7 + $0x80] sm:$0xff]
    %v317 = vld [vmem:[#allocation7 + $0x88] sm:$0xff]
    %v318 = vld [vmem:[#allocation7 + $0x90] sm:$0xff]
    %v319 = vld [vmem:[#allocation7 + $0x98] sm:$0xff]
    %v320 = vld [vmem:[#allocation7 + $0xa0] sm:$0xff]
    %v321 = vld [vmem:[#allocation7 + $0xa8] sm:$0xff]
    %v322 = vld [vmem:[#allocation7 + $0xb0] sm:$0xff]
    %v323 = vld [vmem:[#allocation7 + $0xb8] sm:$0xff]
    %v324 = vld [vmem:[#allocation7 + $0xc0] sm:$0xff]
    %v325 = vld [vmem:[#allocation7 + $0xc8] sm:$0xff]
    %v326 = vld [vmem:[#allocation7 + $0xd0] sm:$0xff]
    %v327 = vld [vmem:[#allocation7 + $0xd8] sm:$0xff]
    %v328 = vld [vmem:[#allocation7 + $0xe0] sm:$0xff]
    %v329 = vld [vmem:[#allocation7 + $0xe8] sm:$0xff]
    %v330 = vld [vmem:[#allocation7 + $0xf0] sm:$0xff]
    %v331 = vld [vmem:[#allocation7 + $0xf8] sm:$0xff]
    %v332 = vld [vmem:[#allocation7 + $0x100] sm:$0xff]
    %v333 = vld [vmem:[#allocation7 + $0x108] sm:$0xff]
    %v334 = vld [vmem:[#allocation7 + $0x110] sm:$0xff]
    %v335 = vld [vmem:[#allocation7 + $0x118] sm:$0xff]
    %v336 = vld [vmem:[#allocation7 + $0x120] sm:$0xff]
    %v337 = vld [vmem:[#allocation7 + $0x128] sm:$0xff]
    %v338 = vld [vmem:[#allocation7 + $0x130] sm:$0xff]
    %v339 = vld [vmem:[#allocation7 + $0x138] sm:$0xff]
    %v340 = vld [vmem:[#allocation7 + $0x140] sm:$0xff]
    %v341 = vld [vmem:[#allocation7 + $0x148] sm:$0xff]
    %v342 = vld [vmem:[#allocation7 + $0x150] sm:$0xff]
    %v343 = vld [vmem:[#allocation7 + $0x158] sm:$0xff]
    %v344 = vld [vmem:[#allocation7 + $0x160] sm:$0xff]
    %v345 = vld [vmem:[#allocation7 + $0x168] sm:$0xff]
    %v346 = vld [vmem:[#allocation7 + $0x170] sm:$0xff]
    %v347 = vld [vmem:[#allocation7 + $0x178] sm:$0xff]
    %v348 = vld [vmem:[#allocation7 + $0x180] sm:$0xff]
    %v349 = vld [vmem:[#allocation7 + $0x188] sm:$0xff]
    %v350 = vld [vmem:[#allocation7 + $0x190] sm:$0xff]
    %v351 = vld [vmem:[#allocation7 + $0x198] sm:$0xff]
    %v352 = vld [vmem:[#allocation7 + $0x1a0] sm:$0xff]
    %v353 = vld [vmem:[#allocation7 + $0x1a8] sm:$0xff]
    %v354 = vld [vmem:[#allocation7 + $0x1b0] sm:$0xff]
    %v355 = vld [vmem:[#allocation7 + $0x1b8] sm:$0xff]
    %v356 = vld [vmem:[#allocation7 + $0x1c0] sm:$0xff]
    %v357 = vld [vmem:[#allocation7 + $0x1c8] sm:$0xff]
    %v358 = vld [vmem:[#allocation7 + $0x1d0] sm:$0xff]
    %v359 = vld [vmem:[#allocation7 + $0x1d8] sm:$0xff]
    %v360 = vld [vmem:[#allocation7 + $0x1e0] sm:$0xff]
    %v361 = vld [vmem:[#allocation7 + $0x1e8] sm:$0xff]
    %v362 = vld [vmem:[#allocation7 + $0x1f0] sm:$0xff]
    %v363 = vld [vmem:[#allocation7 + $0x1f8] sm:$0xff]
    %v364 = vld [vmem:[#allocation7 + $0x200] sm:$0xff]
    %v365 = vld [vmem:[#allocation7 + $0x208] sm:$0xff]
    %v366 = vld [vmem:[#allocation7 + $0x210] sm:$0xff]
    %v367 = vld [vmem:[#allocation7 + $0x218] sm:$0xff]
    %v368 = vld [vmem:[#allocation7 + $0x220] sm:$0xff]
    %v369 = vld [vmem:[#allocation7 + $0x228] sm:$0xff]
    %v370 = vld [vmem:[#allocation7 + $0x230] sm:$0xff]
    %v371 = vld [vmem:[#allocation7 + $0x238] sm:$0xff]
    %v372 = vld [vmem:[#allocation7 + $0x240] sm:$0xff]
    %v373 = vld [vmem:[#allocation7 + $0x248] sm:$0xff]
    %v374 = vld [vmem:[#allocation7 + $0x250] sm:$0xff]
    %v375 = vld [vmem:[#allocation7 + $0x258] sm:$0xff]
    %v376 = vld [vmem:[#allocation7 + $0x260] sm:$0xff]
    %v377 = vld [vmem:[#allocation7 + $0x268] sm:$0xff]
    %v378 = vld [vmem:[#allocation7 + $0x270] sm:$0xff]
    %v379 = vld [vmem:[#allocation7 + $0x278] sm:$0xff]
    %v380 = vld [vmem:[#allocation7 + $0x280] sm:$0xff]
    %v381 = vld [vmem:[#allocation7 + $0x288] sm:$0xff]
    %v382 = vld [vmem:[#allocation7 + $0x290] sm:$0xff]
    %v383 = vld [vmem:[#allocation7 + $0x298] sm:$0xff]
    %v384 = vld [vmem:[#allocation7 + $0x2a0] sm:$0xff]
    %v385 = vld [vmem:[#allocation7 + $0x2a8] sm:$0xff]
    %v386 = vld [vmem:[#allocation7 + $0x2b0] sm:$0xff]
    %v387 = vld [vmem:[#allocation7 + $0x2b8] sm:$0xff]
    %v388 = vld [vmem:[#allocation7 + $0x2c0] sm:$0xff]
    %v389 = vld [vmem:[#allocation7 + $0x2c8] sm:$0xff]
    %v390 = vld [vmem:[#allocation7 + $0x2d0] sm:$0xff]
    %v391 = vld [vmem:[#allocation7 + $0x2d8] sm:$0xff]
    %v392 = vld [vmem:[#allocation7 + $0x2e0] sm:$0xff]
    %v393 = vld [vmem:[#allocation7 + $0x2e8] sm:$0xff]
    %v394 = vld [vmem:[#allocation7 + $0x2f0] sm:$0xff]
    %v395 = vld [vmem:[#allocation7 + $0x2f8] sm:$0xff]
    %v396 = vld [vmem:[#allocation7 + $0x300] sm:$0xff]
    %v397 = vld [vmem:[#allocation7 + $0x308] sm:$0xff]
    %v398 = vld [vmem:[#allocation7 + $0x310] sm:$0xff]
    %v399 = vld [vmem:[#allocation7 + $0x318] sm:$0xff]
    %v400 = vld [vmem:[#allocation7 + $0x320] sm:$0xff]
    %v401 = vld [vmem:[#allocation7 + $0x328] sm:$0xff]
    %v402 = vld [vmem:[#allocation7 + $0x330] sm:$0xff]
    %v403 = vld [vmem:[#allocation7 + $0x338] sm:$0xff]
    %v404 = vld [vmem:[#allocation7 + $0x340] sm:$0xff]
    %v405 = vld [vmem:[#allocation7 + $0x348] sm:$0xff]
    %v406 = vld [vmem:[#allocation7 + $0x350] sm:$0xff]
    %v407 = vld [vmem:[#allocation7 + $0x358] sm:$0xff]
    %v408 = vld [vmem:[#allocation7 + $0x360] sm:$0xff]
    %v409 = vld [vmem:[#allocation7 + $0x368] sm:$0xff]
    %v410 = vld [vmem:[#allocation7 + $0x370] sm:$0xff]
    %v411 = vld [vmem:[#allocation7 + $0x378] sm:$0xff]
    %v412 = vld [vmem:[#allocation7 + $0x380] sm:$0xff]
    %v413 = vld [vmem:[#allocation7 + $0x388] sm:$0xff]
    %v414 = vld [vmem:[#allocation7 + $0x390] sm:$0xff]
    %v415 = vld [vmem:[#allocation7 + $0x398] sm:$0xff]
    %v416 = vld [vmem:[#allocation7 + $0x3a0] sm:$0xff]
    %v417 = vld [vmem:[#allocation7 + $0x3a8] sm:$0xff]
    %v418 = vld [vmem:[#allocation7 + $0x3b0] sm:$0xff]
    %v419 = vld [vmem:[#allocation7 + $0x3b8] sm:$0xff]
    %v420 = vld [vmem:[#allocation7 + $0x3c0] sm:$0xff]
    %v421 = vld [vmem:[#allocation7 + $0x3c8] sm:$0xff]
    %v422 = vld [vmem:[#allocation7 + $0x3d0] sm:$0xff]
    %v423 = vld [vmem:[#allocation7 + $0x3d8] sm:$0xff]
    %v424 = vld [vmem:[#allocation7 + $0x3e0] sm:$0xff]
    %v425 = vld [vmem:[#allocation7 + $0x3e8] sm:$0xff]
    %v426 = vld [vmem:[#allocation7 + $0x3f0] sm:$0xff]
    %v427 = vld [vmem:[#allocation7 + $0x3f8] sm:$0xff]
    %v428 = vld [vmem:[%s4] sm:$0xf]
    %v430 = vlaneseq
    %v431 = vshrl.u32 %v430, 7
    %v432 = vsub.s32 0, %v431
    %v433 = vrot.slane %v428, %v432
    %v434 = vlaneseq
    %v435 = vshrl.u32 %v434, 7
    %v436 = vsub.s32 1, %v435
    %v437 = vrot.slane %v428, %v436
    %v438 = vlaneseq
    %v439 = vshrl.u32 %v438, 7
    %v440 = vsub.s32 2, %v439
    %v441 = vrot.slane %v428, %v440
    %v442 = vlaneseq
    %v443 = vshrl.u32 %v442, 7
    %v444 = vsub.s32 3, %v443
    %v445 = vrot.slane %v428, %v444
    %v578 = vunpack.c.l.b16 %v300
    %v579 = vunpack.c.h.b16 %v300
    %v580 = vunpack.c.l.b16 %v301
    %v581 = vunpack.c.h.b16 %v301
    %v582 = vunpack.c.l.b16 %v302
    %v583 = vunpack.c.h.b16 %v302
    %v584 = vunpack.c.l.b16 %v303
    %v585 = vunpack.c.h.b16 %v303
    %v586 = vunpack.c.l.b16 %v304
    %v587 = vunpack.c.h.b16 %v304
    %v588 = vunpack.c.l.b16 %v305
    %v589 = vunpack.c.h.b16 %v305
    %v590 = vunpack.c.l.b16 %v306
    %v591 = vunpack.c.h.b16 %v306
    %v592 = vunpack.c.l.b16 %v307
    %v593 = vunpack.c.h.b16 %v307
    %v594 = vunpack.c.l.b16 %v308
    %v595 = vunpack.c.h.b16 %v308
    %v596 = vunpack.c.l.b16 %v309
    %v597 = vunpack.c.h.b16 %v309
    %v598 = vunpack.c.l.b16 %v310
    %v599 = vunpack.c.h.b16 %v310
    %v600 = vunpack.c.l.b16 %v311
    %v601 = vunpack.c.h.b16 %v311
    %v602 = vunpack.c.l.b16 %v312
    %v603 = vunpack.c.h.b16 %v312
    %v604 = vunpack.c.l.b16 %v313
    %v605 = vunpack.c.h.b16 %v313
    %v606 = vunpack.c.l.b16 %v314
    %v607 = vunpack.c.h.b16 %v314
    %v608 = vunpack.c.l.b16 %v315
    %v609 = vunpack.c.h.b16 %v315
    %v610 = vunpack.c.l.b16 %v316
    %v611 = vunpack.c.h.b16 %v316
    %v612 = vunpack.c.l.b16 %v317
    %v613 = vunpack.c.h.b16 %v317
    %v614 = vunpack.c.l.b16 %v318
    %v615 = vunpack.c.h.b16 %v318
    %v616 = vunpack.c.l.b16 %v319
    %v617 = vunpack.c.h.b16 %v319
    %v618 = vunpack.c.l.b16 %v320
    %v619 = vunpack.c.h.b16 %v320
    %v620 = vunpack.c.l.b16 %v321
    %v621 = vunpack.c.h.b16 %v321
    %v622 = vunpack.c.l.b16 %v322
    %v623 = vunpack.c.h.b16 %v322
    %v624 = vunpack.c.l.b16 %v323
    %v625 = vunpack.c.h.b16 %v323
    %v626 = vunpack.c.l.b16 %v324
    %v627 = vunpack.c.h.b16 %v324
    %v628 = vunpack.c.l.b16 %v325
    %v629 = vunpack.c.h.b16 %v325
    %v630 = vunpack.c.l.b16 %v326
    %v631 = vunpack.c.h.b16 %v326
    %v632 = vunpack.c.l.b16 %v327
    %v633 = vunpack.c.h.b16 %v327
    %v634 = vunpack.c.l.b16 %v328
    %v635 = vunpack.c.h.b16 %v328
    %v636 = vunpack.c.l.b16 %v329
    %v637 = vunpack.c.h.b16 %v329
    %v638 = vunpack.c.l.b16 %v330
    %v639 = vunpack.c.h.b16 %v330
    %v640 = vunpack.c.l.b16 %v331
    %v641 = vunpack.c.h.b16 %v331
    %v642 = vunpack.c.l.b16 %v332
    %v643 = vunpack.c.h.b16 %v332
    %v644 = vunpack.c.l.b16 %v333
    %v645 = vunpack.c.h.b16 %v333
    %v646 = vunpack.c.l.b16 %v334
    %v647 = vunpack.c.h.b16 %v334
    %v648 = vunpack.c.l.b16 %v335
    %v649 = vunpack.c.h.b16 %v335
    %v650 = vunpack.c.l.b16 %v336
    %v651 = vunpack.c.h.b16 %v336
    %v652 = vunpack.c.l.b16 %v337
    %v653 = vunpack.c.h.b16 %v337
    %v654 = vunpack.c.l.b16 %v338
    %v655 = vunpack.c.h.b16 %v338
    %v656 = vunpack.c.l.b16 %v339
    %v657 = vunpack.c.h.b16 %v339
    %v658 = vunpack.c.l.b16 %v340
    %v659 = vunpack.c.h.b16 %v340
    %v660 = vunpack.c.l.b16 %v341
    %v661 = vunpack.c.h.b16 %v341
    %v662 = vunpack.c.l.b16 %v342
    %v663 = vunpack.c.h.b16 %v342
    %v664 = vunpack.c.l.b16 %v343
    %v665 = vunpack.c.h.b16 %v343
    %v666 = vunpack.c.l.b16 %v344
    %v667 = vunpack.c.h.b16 %v344
    %v668 = vunpack.c.l.b16 %v345
    %v669 = vunpack.c.h.b16 %v345
    %v670 = vunpack.c.l.b16 %v346
    %v671 = vunpack.c.h.b16 %v346
    %v672 = vunpack.c.l.b16 %v347
    %v673 = vunpack.c.h.b16 %v347
    %v674 = vunpack.c.l.b16 %v348
    %v675 = vunpack.c.h.b16 %v348
    %v676 = vunpack.c.l.b16 %v349
    %v677 = vunpack.c.h.b16 %v349
    %v678 = vunpack.c.l.b16 %v350
    %v679 = vunpack.c.h.b16 %v350
    %v680 = vunpack.c.l.b16 %v351
    %v681 = vunpack.c.h.b16 %v351
    %v682 = vunpack.c.l.b16 %v352
    %v683 = vunpack.c.h.b16 %v352
    %v684 = vunpack.c.l.b16 %v353
    %v685 = vunpack.c.h.b16 %v353
    %v686 = vunpack.c.l.b16 %v354
    %v687 = vunpack.c.h.b16 %v354
    %v688 = vunpack.c.l.b16 %v355
    %v689 = vunpack.c.h.b16 %v355
    %v690 = vunpack.c.l.b16 %v356
    %v691 = vunpack.c.h.b16 %v356
    %v692 = vunpack.c.l.b16 %v357
    %v693 = vunpack.c.h.b16 %v357
    %v694 = vunpack.c.l.b16 %v358
    %v695 = vunpack.c.h.b16 %v358
    %v696 = vunpack.c.l.b16 %v359
    %v697 = vunpack.c.h.b16 %v359
    %v698 = vunpack.c.l.b16 %v360
    %v699 = vunpack.c.h.b16 %v360
    %v700 = vunpack.c.l.b16 %v361
    %v701 = vunpack.c.h.b16 %v361
    %v702 = vunpack.c.l.b16 %v362
    %v703 = vunpack.c.h.b16 %v362
    %v704 = vunpack.c.l.b16 %v363
    %v705 = vunpack.c.h.b16 %v363
    %v706 = vunpack.c.l.b16 %v364
    %v707 = vunpack.c.h.b16 %v364
    %v708 = vunpack.c.l.b16 %v365
    %v709 = vunpack.c.h.b16 %v365
    %v710 = vunpack.c.l.b16 %v366
    %v711 = vunpack.c.h.b16 %v366
    %v712 = vunpack.c.l.b16 %v367
    %v713 = vunpack.c.h.b16 %v367
    %v714 = vunpack.c.l.b16 %v368
    %v715 = vunpack.c.h.b16 %v368
    %v716 = vunpack.c.l.b16 %v369
    %v717 = vunpack.c.h.b16 %v369
    %v718 = vunpack.c.l.b16 %v370
    %v719 = vunpack.c.h.b16 %v370
    %v720 = vunpack.c.l.b16 %v371
    %v721 = vunpack.c.h.b16 %v371
    %v722 = vunpack.c.l.b16 %v372
    %v723 = vunpack.c.h.b16 %v372
    %v724 = vunpack.c.l.b16 %v373
    %v725 = vunpack.c.h.b16 %v373
    %v726 = vunpack.c.l.b16 %v374
    %v727 = vunpack.c.h.b16 %v374
    %v728 = vunpack.c.l.b16 %v375
    %v729 = vunpack.c.h.b16 %v375
    %v730 = vunpack.c.l.b16 %v376
    %v731 = vunpack.c.h.b16 %v376
    %v732 = vunpack.c.l.b16 %v377
    %v733 = vunpack.c.h.b16 %v377
    %v734 = vunpack.c.l.b16 %v378
    %v735 = vunpack.c.h.b16 %v378
    %v736 = vunpack.c.l.b16 %v379
    %v737 = vunpack.c.h.b16 %v379
    %v738 = vunpack.c.l.b16 %v380
    %v739 = vunpack.c.h.b16 %v380
    %v740 = vunpack.c.l.b16 %v381
    %v741 = vunpack.c.h.b16 %v381
    %v742 = vunpack.c.l.b16 %v382
    %v743 = vunpack.c.h.b16 %v382
    %v744 = vunpack.c.l.b16 %v383
    %v745 = vunpack.c.h.b16 %v383
    %v746 = vunpack.c.l.b16 %v384
    %v747 = vunpack.c.h.b16 %v384
    %v748 = vunpack.c.l.b16 %v385
    %v749 = vunpack.c.h.b16 %v385
    %v750 = vunpack.c.l.b16 %v386
    %v751 = vunpack.c.h.b16 %v386
    %v752 = vunpack.c.l.b16 %v387
    %v753 = vunpack.c.h.b16 %v387
    %v754 = vunpack.c.l.b16 %v388
    %v755 = vunpack.c.h.b16 %v388
    %v756 = vunpack.c.l.b16 %v389
    %v757 = vunpack.c.h.b16 %v389
    %v758 = vunpack.c.l.b16 %v390
    %v759 = vunpack.c.h.b16 %v390
    %v760 = vunpack.c.l.b16 %v391
    %v761 = vunpack.c.h.b16 %v391
    %v762 = vunpack.c.l.b16 %v392
    %v763 = vunpack.c.h.b16 %v392
    %v764 = vunpack.c.l.b16 %v393
    %v765 = vunpack.c.h.b16 %v393
    %v766 = vunpack.c.l.b16 %v394
    %v767 = vunpack.c.h.b16 %v394
    %v768 = vunpack.c.l.b16 %v395
    %v769 = vunpack.c.h.b16 %v395
    %v770 = vunpack.c.l.b16 %v396
    %v771 = vunpack.c.h.b16 %v396
    %v772 = vunpack.c.l.b16 %v397
    %v773 = vunpack.c.h.b16 %v397
    %v774 = vunpack.c.l.b16 %v398
    %v775 = vunpack.c.h.b16 %v398
    %v776 = vunpack.c.l.b16 %v399
    %v777 = vunpack.c.h.b16 %v399
    %v778 = vunpack.c.l.b16 %v400
    %v779 = vunpack.c.h.b16 %v400
    %v780 = vunpack.c.l.b16 %v401
    %v781 = vunpack.c.h.b16 %v401
    %v782 = vunpack.c.l.b16 %v402
    %v783 = vunpack.c.h.b16 %v402
    %v784 = vunpack.c.l.b16 %v403
    %v785 = vunpack.c.h.b16 %v403
    %v786 = vunpack.c.l.b16 %v404
    %v787 = vunpack.c.h.b16 %v404
    %v788 = vunpack.c.l.b16 %v405
    %v789 = vunpack.c.h.b16 %v405
    %v790 = vunpack.c.l.b16 %v406
    %v791 = vunpack.c.h.b16 %v406
    %v792 = vunpack.c.l.b16 %v407
    %v793 = vunpack.c.h.b16 %v407
    %v794 = vunpack.c.l.b16 %v408
    %v795 = vunpack.c.h.b16 %v408
    %v796 = vunpack.c.l.b16 %v409
    %v797 = vunpack.c.h.b16 %v409
    %v798 = vunpack.c.l.b16 %v410
    %v799 = vunpack.c.h.b16 %v410
    %v800 = vunpack.c.l.b16 %v411
    %v801 = vunpack.c.h.b16 %v411
    %v802 = vunpack.c.l.b16 %v412
    %v803 = vunpack.c.h.b16 %v412
    %v804 = vunpack.c.l.b16 %v413
    %v805 = vunpack.c.h.b16 %v413
    %v806 = vunpack.c.l.b16 %v414
    %v807 = vunpack.c.h.b16 %v414
    %v808 = vunpack.c.l.b16 %v415
    %v809 = vunpack.c.h.b16 %v415
    %v810 = vunpack.c.l.b16 %v416
    %v811 = vunpack.c.h.b16 %v416
    %v812 = vunpack.c.l.b16 %v417
    %v813 = vunpack.c.h.b16 %v417
    %v814 = vunpack.c.l.b16 %v418
    %v815 = vunpack.c.h.b16 %v418
    %v816 = vunpack.c.l.b16 %v419
    %v817 = vunpack.c.h.b16 %v419
    %v818 = vunpack.c.l.b16 %v420
    %v819 = vunpack.c.h.b16 %v420
    %v820 = vunpack.c.l.b16 %v421
    %v821 = vunpack.c.h.b16 %v421
    %v822 = vunpack.c.l.b16 %v422
    %v823 = vunpack.c.h.b16 %v422
    %v824 = vunpack.c.l.b16 %v423
    %v825 = vunpack.c.h.b16 %v423
    %v826 = vunpack.c.l.b16 %v424
    %v827 = vunpack.c.h.b16 %v424
    %v828 = vunpack.c.l.b16 %v425
    %v829 = vunpack.c.h.b16 %v425
    %v830 = vunpack.c.l.b16 %v426
    %v831 = vunpack.c.h.b16 %v426
    %v832 = vunpack.c.l.b16 %v427
    %v833 = vunpack.c.h.b16 %v427
    %v834 = vpack.c.b16 %v582, %v578
    %v835 = vpack.c.b16 %v583, %v579
    %v836 = vpack.c.b16 %v584, %v580
    %v837 = vpack.c.b16 %v585, %v581
    %v838 = vpack.c.b16 %v590, %v586
    %v839 = vpack.c.b16 %v591, %v587
    %v840 = vpack.c.b16 %v592, %v588
    %v841 = vpack.c.b16 %v593, %v589
    %v842 = vpack.c.b16 %v598, %v594
    %v843 = vpack.c.b16 %v599, %v595
    %v844 = vpack.c.b16 %v600, %v596
    %v845 = vpack.c.b16 %v601, %v597
    %v846 = vpack.c.b16 %v606, %v602
    %v847 = vpack.c.b16 %v607, %v603
    %v848 = vpack.c.b16 %v608, %v604
    %v849 = vpack.c.b16 %v609, %v605
    %v850 = vpack.c.b16 %v614, %v610
    %v851 = vpack.c.b16 %v615, %v611
    %v852 = vpack.c.b16 %v616, %v612
    %v853 = vpack.c.b16 %v617, %v613
    %v854 = vpack.c.b16 %v622, %v618
    %v855 = vpack.c.b16 %v623, %v619
    %v856 = vpack.c.b16 %v624, %v620
    %v857 = vpack.c.b16 %v625, %v621
    %v858 = vpack.c.b16 %v630, %v626
    %v859 = vpack.c.b16 %v631, %v627
    %v860 = vpack.c.b16 %v632, %v628
    %v861 = vpack.c.b16 %v633, %v629
    %v862 = vpack.c.b16 %v638, %v634
    %v863 = vpack.c.b16 %v639, %v635
    %v864 = vpack.c.b16 %v640, %v636
    %v865 = vpack.c.b16 %v641, %v637
    %v866 = vpack.c.b16 %v646, %v642
    %v867 = vpack.c.b16 %v647, %v643
    %v868 = vpack.c.b16 %v648, %v644
    %v869 = vpack.c.b16 %v649, %v645
    %v870 = vpack.c.b16 %v654, %v650
    %v871 = vpack.c.b16 %v655, %v651
    %v872 = vpack.c.b16 %v656, %v652
    %v873 = vpack.c.b16 %v657, %v653
    %v874 = vpack.c.b16 %v662, %v658
    %v875 = vpack.c.b16 %v663, %v659
    %v876 = vpack.c.b16 %v664, %v660
    %v877 = vpack.c.b16 %v665, %v661
    %v878 = vpack.c.b16 %v670, %v666
    %v879 = vpack.c.b16 %v671, %v667
    %v880 = vpack.c.b16 %v672, %v668
    %v881 = vpack.c.b16 %v673, %v669
    %v882 = vpack.c.b16 %v678, %v674
    %v883 = vpack.c.b16 %v679, %v675
    %v884 = vpack.c.b16 %v680, %v676
    %v885 = vpack.c.b16 %v681, %v677
    %v886 = vpack.c.b16 %v686, %v682
    %v887 = vpack.c.b16 %v687, %v683
    %v888 = vpack.c.b16 %v688, %v684
    %v889 = vpack.c.b16 %v689, %v685
    %v890 = vpack.c.b16 %v694, %v690
    %v891 = vpack.c.b16 %v695, %v691
    %v892 = vpack.c.b16 %v696, %v692
    %v893 = vpack.c.b16 %v697, %v693
    %v894 = vpack.c.b16 %v702, %v698
    %v895 = vpack.c.b16 %v703, %v699
    %v896 = vpack.c.b16 %v704, %v700
    %v897 = vpack.c.b16 %v705, %v701
    %v898 = vpack.c.b16 %v710, %v706
    %v899 = vpack.c.b16 %v711, %v707
    %v900 = vpack.c.b16 %v712, %v708
    %v901 = vpack.c.b16 %v713, %v709
    %v902 = vpack.c.b16 %v718, %v714
    %v903 = vpack.c.b16 %v719, %v715
    %v904 = vpack.c.b16 %v720, %v716
    %v905 = vpack.c.b16 %v721, %v717
    %v906 = vpack.c.b16 %v726, %v722
    %v907 = vpack.c.b16 %v727, %v723
    %v908 = vpack.c.b16 %v728, %v724
    %v909 = vpack.c.b16 %v729, %v725
    %v910 = vpack.c.b16 %v734, %v730
    %v911 = vpack.c.b16 %v735, %v731
    %v912 = vpack.c.b16 %v736, %v732
    %v913 = vpack.c.b16 %v737, %v733
    %v914 = vpack.c.b16 %v742, %v738
    %v915 = vpack.c.b16 %v743, %v739
    %v916 = vpack.c.b16 %v744, %v740
    %v917 = vpack.c.b16 %v745, %v741
    %v918 = vpack.c.b16 %v750, %v746
    %v919 = vpack.c.b16 %v751, %v747
    %v920 = vpack.c.b16 %v752, %v748
    %v921 = vpack.c.b16 %v753, %v749
    %v922 = vpack.c.b16 %v758, %v754
    %v923 = vpack.c.b16 %v759, %v755
    %v924 = vpack.c.b16 %v760, %v756
    %v925 = vpack.c.b16 %v761, %v757
    %v926 = vpack.c.b16 %v766, %v762
    %v927 = vpack.c.b16 %v767, %v763
    %v928 = vpack.c.b16 %v768, %v764
    %v929 = vpack.c.b16 %v769, %v765
    %v930 = vpack.c.b16 %v774, %v770
    %v931 = vpack.c.b16 %v775, %v771
    %v932 = vpack.c.b16 %v776, %v772
    %v933 = vpack.c.b16 %v777, %v773
    %v934 = vpack.c.b16 %v782, %v778
    %v935 = vpack.c.b16 %v783, %v779
    %v936 = vpack.c.b16 %v784, %v780
    %v937 = vpack.c.b16 %v785, %v781
    %v938 = vpack.c.b16 %v790, %v786
    %v939 = vpack.c.b16 %v791, %v787
    %v940 = vpack.c.b16 %v792, %v788
    %v941 = vpack.c.b16 %v793, %v789
    %v942 = vpack.c.b16 %v798, %v794
    %v943 = vpack.c.b16 %v799, %v795
    %v944 = vpack.c.b16 %v800, %v796
    %v945 = vpack.c.b16 %v801, %v797
    %v946 = vpack.c.b16 %v806, %v802
    %v947 = vpack.c.b16 %v807, %v803
    %v948 = vpack.c.b16 %v808, %v804
    %v949 = vpack.c.b16 %v809, %v805
    %v950 = vpack.c.b16 %v814, %v810
    %v951 = vpack.c.b16 %v815, %v811
    %v952 = vpack.c.b16 %v816, %v812
    %v953 = vpack.c.b16 %v817, %v813
    %v954 = vpack.c.b16 %v822, %v818
    %v955 = vpack.c.b16 %v823, %v819
    %v956 = vpack.c.b16 %v824, %v820
    %v957 = vpack.c.b16 %v825, %v821
    %v958 = vpack.c.b16 %v830, %v826
    %v959 = vpack.c.b16 %v831, %v827
    %v960 = vpack.c.b16 %v832, %v828
    %v961 = vpack.c.b16 %v833, %v829
    %1090 = vmatprep.subr.bf16.mxu0 %v863
    %1091 = vmatpush1.bf16.msra.mxu0 %v862
    %1092 = vmatprep.subr.bf16.mxu0 %v859
    %1093 = vmatpush1.bf16.msra.mxu0 %v858
    %1094 = vmatprep.subr.bf16.mxu0 %v855
    %1095 = vmatpush1.bf16.msra.mxu0 %v854
    %1096 = vmatprep.subr.bf16.mxu0 %v851
    %1097 = vmatpush1.bf16.msra.mxu0 %v850
    %1098 = vmatprep.subr.bf16.mxu0 %v847
    %1099 = vmatpush1.bf16.msra.mxu0 %v846
    %1100 = vmatprep.subr.bf16.mxu0 %v843
    %1101 = vmatpush1.bf16.msra.mxu0 %v842
    %1102 = vmatprep.subr.bf16.mxu0 %v839
    %1103 = vmatpush1.bf16.msra.mxu0 %v838
    %1104 = vmatprep.subr.bf16.mxu0 %v835
    %1105 = vmatpush1.bf16.msra.mxu0 %v834
    %1106 = vmatprep.subr.bf16.mxu0 %v895
    %1107 = vmatpush2.bf16.msra.mxu0 %v894
    %1108 = vmatprep.subr.bf16.mxu0 %v891
    %1109 = vmatpush2.bf16.msra.mxu0 %v890
    %1110 = vmatprep.subr.bf16.mxu0 %v887
    %1111 = vmatpush2.bf16.msra.mxu0 %v886
    %1112 = vmatprep.subr.bf16.mxu0 %v883
    %1113 = vmatpush2.bf16.msra.mxu0 %v882
    %1114 = vmatprep.subr.bf16.mxu0 %v879
    %1115 = vmatpush2.bf16.msra.mxu0 %v878
    %1116 = vmatprep.subr.bf16.mxu0 %v875
    %1117 = vmatpush2.bf16.msra.mxu0 %v874
    %1118 = vmatprep.subr.bf16.mxu0 %v871
    %1119 = vmatpush2.bf16.msra.mxu0 %v870
    %1120 = vmatprep.subr.bf16.mxu0 %v867
    %1121 = vmatpush2.bf16.msra.mxu0 %v866
    %1122 = vmatprep.mubr.bf16.mxu0 %v297
    %1123 = vmatmul.mubr.bf16.gmra.mxu0 %v296
    %v1124 = vpop.f32.mrf.mxu0
    %v1125 = vadd.f32 %v433, %v1124
    %v1126 = vpop.f32.mrf.mxu0
    %v1127 = vadd.f32 %v437, %v1126
    %v1128 = vpop.f32.mrf.mxu0
    %v1129 = vpop.f32.mrf.mxu0
    %1130 = vdwg.mxu0
    %1131 = vmatprep.subr.bf16.mxu0 %v927
    %1132 = vmatpush1.bf16.msra.mxu0 %v926
    %1133 = vmatprep.subr.bf16.mxu0 %v923
    %1134 = vmatpush1.bf16.msra.mxu0 %v922
    %1135 = vmatprep.subr.bf16.mxu0 %v919
    %1136 = vmatpush1.bf16.msra.mxu0 %v918
    %1137 = vmatprep.subr.bf16.mxu0 %v915
    %1138 = vmatpush1.bf16.msra.mxu0 %v914
    %1139 = vmatprep.subr.bf16.mxu0 %v911
    %1140 = vmatpush1.bf16.msra.mxu0 %v910
    %1141 = vmatprep.subr.bf16.mxu0 %v907
    %1142 = vmatpush1.bf16.msra.mxu0 %v906
    %1143 = vmatprep.subr.bf16.mxu0 %v903
    %1144 = vmatpush1.bf16.msra.mxu0 %v902
    %1145 = vmatprep.subr.bf16.mxu0 %v899
    %1146 = vmatpush1.bf16.msra.mxu0 %v898
    %1147 = vmatprep.subr.bf16.mxu0 %v959
    %1148 = vmatpush2.bf16.msra.mxu0 %v958
    %1149 = vmatprep.subr.bf16.mxu0 %v955
    %1150 = vmatpush2.bf16.msra.mxu0 %v954
    %1151 = vmatprep.subr.bf16.mxu0 %v951
    %1152 = vmatpush2.bf16.msra.mxu0 %v950
    %1153 = vmatprep.subr.bf16.mxu0 %v947
    %1154 = vmatpush2.bf16.msra.mxu0 %v946
    %1155 = vmatprep.subr.bf16.mxu0 %v943
    %1156 = vmatpush2.bf16.msra.mxu0 %v942
    %1157 = vmatprep.subr.bf16.mxu0 %v939
    %1158 = vmatpush2.bf16.msra.mxu0 %v938
    %1159 = vmatprep.subr.bf16.mxu0 %v935
    %1160 = vmatpush2.bf16.msra.mxu0 %v934
    %1161 = vmatprep.subr.bf16.mxu0 %v931
    %1162 = vmatpush2.bf16.msra.mxu0 %v930
    %1163 = vmatprep.mubr.bf16.mxu0 %v299
    %1164 = vmatmul.mubr.bf16.gmra.mxu0 %v298
    %v1165 = vpop.f32.mrf.mxu0
    %v1166 = vadd.f32 %v1125, %v1165
    %v1167 = vpop.f32.mrf.mxu0
    %v1168 = vadd.f32 %v1127, %v1167
    %v1169 = vpop.f32.mrf.mxu0
    %v1170 = vpop.f32.mrf.mxu0
    %1171 = vdwg.mxu0
    %1172 = vmatprep.subr.bf16.mxu0 %v865
    %1173 = vmatpush1.bf16.msra.mxu0 %v864
    %1174 = vmatprep.subr.bf16.mxu0 %v861
    %1175 = vmatpush1.bf16.msra.mxu0 %v860
    %1176 = vmatprep.subr.bf16.mxu0 %v857
    %1177 = vmatpush1.bf16.msra.mxu0 %v856
    %1178 = vmatprep.subr.bf16.mxu0 %v853
    %1179 = vmatpush1.bf16.msra.mxu0 %v852
    %1180 = vmatprep.subr.bf16.mxu0 %v849
    %1181 = vmatpush1.bf16.msra.mxu0 %v848
    %1182 = vmatprep.subr.bf16.mxu0 %v845
    %1183 = vmatpush1.bf16.msra.mxu0 %v844
    %1184 = vmatprep.subr.bf16.mxu0 %v841
    %1185 = vmatpush1.bf16.msra.mxu0 %v840
    %1186 = vmatprep.subr.bf16.mxu0 %v837
    %1187 = vmatpush1.bf16.msra.mxu0 %v836
    %1188 = vmatprep.subr.bf16.mxu0 %v897
    %1189 = vmatpush2.bf16.msra.mxu0 %v896
    %1190 = vmatprep.subr.bf16.mxu0 %v893
    %1191 = vmatpush2.bf16.msra.mxu0 %v892
    %1192 = vmatprep.subr.bf16.mxu0 %v889
    %1193 = vmatpush2.bf16.msra.mxu0 %v888
    %1194 = vmatprep.subr.bf16.mxu0 %v885
    %1195 = vmatpush2.bf16.msra.mxu0 %v884
    %1196 = vmatprep.subr.bf16.mxu0 %v881
    %1197 = vmatpush2.bf16.msra.mxu0 %v880
    %1198 = vmatprep.subr.bf16.mxu0 %v877
    %1199 = vmatpush2.bf16.msra.mxu0 %v876
    %1200 = vmatprep.subr.bf16.mxu0 %v873
    %1201 = vmatpush2.bf16.msra.mxu0 %v872
    %1202 = vmatprep.subr.bf16.mxu0 %v869
    %1203 = vmatpush2.bf16.msra.mxu0 %v868
    %1204 = vmatprep.mubr.bf16.mxu0 %v297
    %1205 = vmatmul.mubr.bf16.gmra.mxu0 %v296
    %v1206 = vpop.f32.mrf.mxu0
    %v1207 = vadd.f32 %v441, %v1206
    %v1208 = vpop.f32.mrf.mxu0
    %v1209 = vadd.f32 %v445, %v1208
    %v1210 = vpop.f32.mrf.mxu0
    %v1211 = vpop.f32.mrf.mxu0
    %1212 = vdwg.mxu0
    %1213 = vmatprep.subr.bf16.mxu0 %v929
    %1214 = vmatpush1.bf16.msra.mxu0 %v928
    %1215 = vmatprep.subr.bf16.mxu0 %v925
    %1216 = vmatpush1.bf16.msra.mxu0 %v924
    %1217 = vmatprep.subr.bf16.mxu0 %v921
    %1218 = vmatpush1.bf16.msra.mxu0 %v920
    %1219 = vmatprep.subr.bf16.mxu0 %v917
    %1220 = vmatpush1.bf16.msra.mxu0 %v916
    %1221 = vmatprep.subr.bf16.mxu0 %v913
    %1222 = vmatpush1.bf16.msra.mxu0 %v912
    %1223 = vmatprep.subr.bf16.mxu0 %v909
    %1224 = vmatpush1.bf16.msra.mxu0 %v908
    %1225 = vmatprep.subr.bf16.mxu0 %v905
    %1226 = vmatpush1.bf16.msra.mxu0 %v904
    %1227 = vmatprep.subr.bf16.mxu0 %v901
    %1228 = vmatpush1.bf16.msra.mxu0 %v900
    %1229 = vmatprep.subr.bf16.mxu0 %v961
    %1230 = vmatpush2.bf16.msra.mxu0 %v960
    %1231 = vmatprep.subr.bf16.mxu0 %v957
    %1232 = vmatpush2.bf16.msra.mxu0 %v956
    %1233 = vmatprep.subr.bf16.mxu0 %v953
    %1234 = vmatpush2.bf16.msra.mxu0 %v952
    %1235 = vmatprep.subr.bf16.mxu0 %v949
    %1236 = vmatpush2.bf16.msra.mxu0 %v948
    %1237 = vmatprep.subr.bf16.mxu0 %v945
    %1238 = vmatpush2.bf16.msra.mxu0 %v944
    %1239 = vmatprep.subr.bf16.mxu0 %v941
    %1240 = vmatpush2.bf16.msra.mxu0 %v940
    %1241 = vmatprep.subr.bf16.mxu0 %v937
    %1242 = vmatpush2.bf16.msra.mxu0 %v936
    %1243 = vmatprep.subr.bf16.mxu0 %v933
    %1244 = vmatpush2.bf16.msra.mxu0 %v932
    %1245 = vmatprep.mubr.bf16.mxu0 %v299
    %1246 = vmatmul.mubr.bf16.gmra.mxu0 %v298
    %v1247 = vpop.f32.mrf.mxu0
    %v1248 = vadd.f32 %v1207, %v1247
    %v1249 = vpop.f32.mrf.mxu0
    %v1250 = vadd.f32 %v1209, %v1249
    %v1251 = vpop.f32.mrf.mxu0
    %v1252 = vpop.f32.mrf.mxu0
    %1253 = vdwg.mxu0
    %v1254 = vmax.f32 %v1166, 0.0
    %v1255 = vmax.f32 %v1168, 0.0
    %v1256 = vmax.f32 %v1248, 0.0
    %v1257 = vmax.f32 %v1250, 0.0
    %v1258 = vpack.c.bf16 %v1254, %v1254
    %v1259 = vpack.c.bf16 %v1255, %v1255
    %v1260 = vpack.c.bf16 %v1256, %v1256
    %v1261 = vpack.c.bf16 %v1257, %v1257
    %v1262 = vld [vmem:[#allocation8] sm:$0xff]
    %v1263 = vld [vmem:[#allocation8 + $0x8] sm:$0xff]
    %v1264 = vld [vmem:[#allocation8 + $0x10] sm:$0xff]
    %v1265 = vld [vmem:[#allocation8 + $0x18] sm:$0xff]
    %v1266 = vld [vmem:[#allocation8 + $0x20] sm:$0xff]
    %v1267 = vld [vmem:[#allocation8 + $0x28] sm:$0xff]
    %v1268 = vld [vmem:[#allocation8 + $0x30] sm:$0xff]
    %v1269 = vld [vmem:[#allocation8 + $0x38] sm:$0xff]
    %v1270 = vld [vmem:[#allocation8 + $0x40] sm:$0xff]
    %v1271 = vld [vmem:[#allocation8 + $0x48] sm:$0xff]
    %v1272 = vld [vmem:[#allocation8 + $0x50] sm:$0xff]
    %v1273 = vld [vmem:[#allocation8 + $0x58] sm:$0xff]
    %v1274 = vld [vmem:[#allocation8 + $0x60] sm:$0xff]
    %v1275 = vld [vmem:[#allocation8 + $0x68] sm:$0xff]
    %v1276 = vld [vmem:[#allocation8 + $0x70] sm:$0xff]
    %v1277 = vld [vmem:[#allocation8 + $0x78] sm:$0xff]
    %v1278 = vld [vmem:[#allocation8 + $0x80] sm:$0xff]
    %v1279 = vld [vmem:[#allocation8 + $0x88] sm:$0xff]
    %v1280 = vld [vmem:[#allocation8 + $0x90] sm:$0xff]
    %v1281 = vld [vmem:[#allocation8 + $0x98] sm:$0xff]
    %v1282 = vld [vmem:[#allocation8 + $0xa0] sm:$0xff]
    %v1283 = vld [vmem:[#allocation8 + $0xa8] sm:$0xff]
    %v1284 = vld [vmem:[#allocation8 + $0xb0] sm:$0xff]
    %v1285 = vld [vmem:[#allocation8 + $0xb8] sm:$0xff]
    %v1286 = vld [vmem:[#allocation8 + $0xc0] sm:$0xff]
    %v1287 = vld [vmem:[#allocation8 + $0xc8] sm:$0xff]
    %v1288 = vld [vmem:[#allocation8 + $0xd0] sm:$0xff]
    %v1289 = vld [vmem:[#allocation8 + $0xd8] sm:$0xff]
    %v1290 = vld [vmem:[#allocation8 + $0xe0] sm:$0xff]
    %v1291 = vld [vmem:[#allocation8 + $0xe8] sm:$0xff]
    %v1292 = vld [vmem:[#allocation8 + $0xf0] sm:$0xff]
    %v1293 = vld [vmem:[#allocation8 + $0xf8] sm:$0xff]
    %v1294 = vld [vmem:[#allocation8 + $0x100] sm:$0xff]
    %v1295 = vld [vmem:[#allocation8 + $0x108] sm:$0xff]
    %v1296 = vld [vmem:[#allocation8 + $0x110] sm:$0xff]
    %v1297 = vld [vmem:[#allocation8 + $0x118] sm:$0xff]
    %v1298 = vld [vmem:[#allocation8 + $0x120] sm:$0xff]
    %v1299 = vld [vmem:[#allocation8 + $0x128] sm:$0xff]
    %v1300 = vld [vmem:[#allocation8 + $0x130] sm:$0xff]
    %v1301 = vld [vmem:[#allocation8 + $0x138] sm:$0xff]
    %v1302 = vld [vmem:[#allocation8 + $0x140] sm:$0xff]
    %v1303 = vld [vmem:[#allocation8 + $0x148] sm:$0xff]
    %v1304 = vld [vmem:[#allocation8 + $0x150] sm:$0xff]
    %v1305 = vld [vmem:[#allocation8 + $0x158] sm:$0xff]
    %v1306 = vld [vmem:[#allocation8 + $0x160] sm:$0xff]
    %v1307 = vld [vmem:[#allocation8 + $0x168] sm:$0xff]
    %v1308 = vld [vmem:[#allocation8 + $0x170] sm:$0xff]
    %v1309 = vld [vmem:[#allocation8 + $0x178] sm:$0xff]
    %v1310 = vld [vmem:[#allocation8 + $0x180] sm:$0xff]
    %v1311 = vld [vmem:[#allocation8 + $0x188] sm:$0xff]
    %v1312 = vld [vmem:[#allocation8 + $0x190] sm:$0xff]
    %v1313 = vld [vmem:[#allocation8 + $0x198] sm:$0xff]
    %v1314 = vld [vmem:[#allocation8 + $0x1a0] sm:$0xff]
    %v1315 = vld [vmem:[#allocation8 + $0x1a8] sm:$0xff]
    %v1316 = vld [vmem:[#allocation8 + $0x1b0] sm:$0xff]
    %v1317 = vld [vmem:[#allocation8 + $0x1b8] sm:$0xff]
    %v1318 = vld [vmem:[#allocation8 + $0x1c0] sm:$0xff]
    %v1319 = vld [vmem:[#allocation8 + $0x1c8] sm:$0xff]
    %v1320 = vld [vmem:[#allocation8 + $0x1d0] sm:$0xff]
    %v1321 = vld [vmem:[#allocation8 + $0x1d8] sm:$0xff]
    %v1322 = vld [vmem:[#allocation8 + $0x1e0] sm:$0xff]
    %v1323 = vld [vmem:[#allocation8 + $0x1e8] sm:$0xff]
    %v1324 = vld [vmem:[#allocation8 + $0x1f0] sm:$0xff]
    %v1325 = vld [vmem:[#allocation8 + $0x1f8] sm:$0xff]
    %v1326 = vld [vmem:[#allocation8 + $0x200] sm:$0xff]
    %v1327 = vld [vmem:[#allocation8 + $0x208] sm:$0xff]
    %v1328 = vld [vmem:[#allocation8 + $0x210] sm:$0xff]
    %v1329 = vld [vmem:[#allocation8 + $0x218] sm:$0xff]
    %v1330 = vld [vmem:[#allocation8 + $0x220] sm:$0xff]
    %v1331 = vld [vmem:[#allocation8 + $0x228] sm:$0xff]
    %v1332 = vld [vmem:[#allocation8 + $0x230] sm:$0xff]
    %v1333 = vld [vmem:[#allocation8 + $0x238] sm:$0xff]
    %v1334 = vld [vmem:[#allocation8 + $0x240] sm:$0xff]
    %v1335 = vld [vmem:[#allocation8 + $0x248] sm:$0xff]
    %v1336 = vld [vmem:[#allocation8 + $0x250] sm:$0xff]
    %v1337 = vld [vmem:[#allocation8 + $0x258] sm:$0xff]
    %v1338 = vld [vmem:[#allocation8 + $0x260] sm:$0xff]
    %v1339 = vld [vmem:[#allocation8 + $0x268] sm:$0xff]
    %v1340 = vld [vmem:[#allocation8 + $0x270] sm:$0xff]
    %v1341 = vld [vmem:[#allocation8 + $0x278] sm:$0xff]
    %v1342 = vld [vmem:[#allocation8 + $0x280] sm:$0xff]
    %v1343 = vld [vmem:[#allocation8 + $0x288] sm:$0xff]
    %v1344 = vld [vmem:[#allocation8 + $0x290] sm:$0xff]
    %v1345 = vld [vmem:[#allocation8 + $0x298] sm:$0xff]
    %v1346 = vld [vmem:[#allocation8 + $0x2a0] sm:$0xff]
    %v1347 = vld [vmem:[#allocation8 + $0x2a8] sm:$0xff]
    %v1348 = vld [vmem:[#allocation8 + $0x2b0] sm:$0xff]
    %v1349 = vld [vmem:[#allocation8 + $0x2b8] sm:$0xff]
    %v1350 = vld [vmem:[#allocation8 + $0x2c0] sm:$0xff]
    %v1351 = vld [vmem:[#allocation8 + $0x2c8] sm:$0xff]
    %v1352 = vld [vmem:[#allocation8 + $0x2d0] sm:$0xff]
    %v1353 = vld [vmem:[#allocation8 + $0x2d8] sm:$0xff]
    %v1354 = vld [vmem:[#allocation8 + $0x2e0] sm:$0xff]
    %v1355 = vld [vmem:[#allocation8 + $0x2e8] sm:$0xff]
    %v1356 = vld [vmem:[#allocation8 + $0x2f0] sm:$0xff]
    %v1357 = vld [vmem:[#allocation8 + $0x2f8] sm:$0xff]
    %v1358 = vld [vmem:[#allocation8 + $0x300] sm:$0xff]
    %v1359 = vld [vmem:[#allocation8 + $0x308] sm:$0xff]
    %v1360 = vld [vmem:[#allocation8 + $0x310] sm:$0xff]
    %v1361 = vld [vmem:[#allocation8 + $0x318] sm:$0xff]
    %v1362 = vld [vmem:[#allocation8 + $0x320] sm:$0xff]
    %v1363 = vld [vmem:[#allocation8 + $0x328] sm:$0xff]
    %v1364 = vld [vmem:[#allocation8 + $0x330] sm:$0xff]
    %v1365 = vld [vmem:[#allocation8 + $0x338] sm:$0xff]
    %v1366 = vld [vmem:[#allocation8 + $0x340] sm:$0xff]
    %v1367 = vld [vmem:[#allocation8 + $0x348] sm:$0xff]
    %v1368 = vld [vmem:[#allocation8 + $0x350] sm:$0xff]
    %v1369 = vld [vmem:[#allocation8 + $0x358] sm:$0xff]
    %v1370 = vld [vmem:[#allocation8 + $0x360] sm:$0xff]
    %v1371 = vld [vmem:[#allocation8 + $0x368] sm:$0xff]
    %v1372 = vld [vmem:[#allocation8 + $0x370] sm:$0xff]
    %v1373 = vld [vmem:[#allocation8 + $0x378] sm:$0xff]
    %v1374 = vld [vmem:[#allocation8 + $0x380] sm:$0xff]
    %v1375 = vld [vmem:[#allocation8 + $0x388] sm:$0xff]
    %v1376 = vld [vmem:[#allocation8 + $0x390] sm:$0xff]
    %v1377 = vld [vmem:[#allocation8 + $0x398] sm:$0xff]
    %v1378 = vld [vmem:[#allocation8 + $0x3a0] sm:$0xff]
    %v1379 = vld [vmem:[#allocation8 + $0x3a8] sm:$0xff]
    %v1380 = vld [vmem:[#allocation8 + $0x3b0] sm:$0xff]
    %v1381 = vld [vmem:[#allocation8 + $0x3b8] sm:$0xff]
    %v1382 = vld [vmem:[#allocation8 + $0x3c0] sm:$0xff]
    %v1383 = vld [vmem:[#allocation8 + $0x3c8] sm:$0xff]
    %v1384 = vld [vmem:[#allocation8 + $0x3d0] sm:$0xff]
    %v1385 = vld [vmem:[#allocation8 + $0x3d8] sm:$0xff]
    %v1386 = vld [vmem:[#allocation8 + $0x3e0] sm:$0xff]
    %v1387 = vld [vmem:[#allocation8 + $0x3e8] sm:$0xff]
    %v1388 = vld [vmem:[#allocation8 + $0x3f0] sm:$0xff]
    %v1389 = vld [vmem:[#allocation8 + $0x3f8] sm:$0xff]
    %v1390 = vld [vmem:[%s6] sm:$0xf]
    %v1392 = vlaneseq
    %v1393 = vshrl.u32 %v1392, 7
    %v1394 = vsub.s32 0, %v1393
    %v1395 = vrot.slane %v1390, %v1394
    %v1396 = vlaneseq
    %v1397 = vshrl.u32 %v1396, 7
    %v1398 = vsub.s32 1, %v1397
    %v1399 = vrot.slane %v1390, %v1398
    %v1400 = vlaneseq
    %v1401 = vshrl.u32 %v1400, 7
    %v1402 = vsub.s32 2, %v1401
    %v1403 = vrot.slane %v1390, %v1402
    %v1404 = vlaneseq
    %v1405 = vshrl.u32 %v1404, 7
    %v1406 = vsub.s32 3, %v1405
    %v1407 = vrot.slane %v1390, %v1406
    %v1540 = vunpack.c.l.b16 %v1262
    %v1541 = vunpack.c.h.b16 %v1262
    %v1542 = vunpack.c.l.b16 %v1263
    %v1543 = vunpack.c.h.b16 %v1263
    %v1544 = vunpack.c.l.b16 %v1264
    %v1545 = vunpack.c.h.b16 %v1264
    %v1546 = vunpack.c.l.b16 %v1265
    %v1547 = vunpack.c.h.b16 %v1265
    %v1548 = vunpack.c.l.b16 %v1266
    %v1549 = vunpack.c.h.b16 %v1266
    %v1550 = vunpack.c.l.b16 %v1267
    %v1551 = vunpack.c.h.b16 %v1267
    %v1552 = vunpack.c.l.b16 %v1268
    %v1553 = vunpack.c.h.b16 %v1268
    %v1554 = vunpack.c.l.b16 %v1269
    %v1555 = vunpack.c.h.b16 %v1269
    %v1556 = vunpack.c.l.b16 %v1270
    %v1557 = vunpack.c.h.b16 %v1270
    %v1558 = vunpack.c.l.b16 %v1271
    %v1559 = vunpack.c.h.b16 %v1271
    %v1560 = vunpack.c.l.b16 %v1272
    %v1561 = vunpack.c.h.b16 %v1272
    %v1562 = vunpack.c.l.b16 %v1273
    %v1563 = vunpack.c.h.b16 %v1273
    %v1564 = vunpack.c.l.b16 %v1274
    %v1565 = vunpack.c.h.b16 %v1274
    %v1566 = vunpack.c.l.b16 %v1275
    %v1567 = vunpack.c.h.b16 %v1275
    %v1568 = vunpack.c.l.b16 %v1276
    %v1569 = vunpack.c.h.b16 %v1276
    %v1570 = vunpack.c.l.b16 %v1277
    %v1571 = vunpack.c.h.b16 %v1277
    %v1572 = vunpack.c.l.b16 %v1278
    %v1573 = vunpack.c.h.b16 %v1278
    %v1574 = vunpack.c.l.b16 %v1279
    %v1575 = vunpack.c.h.b16 %v1279
    %v1576 = vunpack.c.l.b16 %v1280
    %v1577 = vunpack.c.h.b16 %v1280
    %v1578 = vunpack.c.l.b16 %v1281
    %v1579 = vunpack.c.h.b16 %v1281
    %v1580 = vunpack.c.l.b16 %v1282
    %v1581 = vunpack.c.h.b16 %v1282
    %v1582 = vunpack.c.l.b16 %v1283
    %v1583 = vunpack.c.h.b16 %v1283
    %v1584 = vunpack.c.l.b16 %v1284
    %v1585 = vunpack.c.h.b16 %v1284
    %v1586 = vunpack.c.l.b16 %v1285
    %v1587 = vunpack.c.h.b16 %v1285
    %v1588 = vunpack.c.l.b16 %v1286
    %v1589 = vunpack.c.h.b16 %v1286
    %v1590 = vunpack.c.l.b16 %v1287
    %v1591 = vunpack.c.h.b16 %v1287
    %v1592 = vunpack.c.l.b16 %v1288
    %v1593 = vunpack.c.h.b16 %v1288
    %v1594 = vunpack.c.l.b16 %v1289
    %v1595 = vunpack.c.h.b16 %v1289
    %v1596 = vunpack.c.l.b16 %v1290
    %v1597 = vunpack.c.h.b16 %v1290
    %v1598 = vunpack.c.l.b16 %v1291
    %v1599 = vunpack.c.h.b16 %v1291
    %v1600 = vunpack.c.l.b16 %v1292
    %v1601 = vunpack.c.h.b16 %v1292
    %v1602 = vunpack.c.l.b16 %v1293
    %v1603 = vunpack.c.h.b16 %v1293
    %v1604 = vunpack.c.l.b16 %v1294
    %v1605 = vunpack.c.h.b16 %v1294
    %v1606 = vunpack.c.l.b16 %v1295
    %v1607 = vunpack.c.h.b16 %v1295
    %v1608 = vunpack.c.l.b16 %v1296
    %v1609 = vunpack.c.h.b16 %v1296
    %v1610 = vunpack.c.l.b16 %v1297
    %v1611 = vunpack.c.h.b16 %v1297
    %v1612 = vunpack.c.l.b16 %v1298
    %v1613 = vunpack.c.h.b16 %v1298
    %v1614 = vunpack.c.l.b16 %v1299
    %v1615 = vunpack.c.h.b16 %v1299
    %v1616 = vunpack.c.l.b16 %v1300
    %v1617 = vunpack.c.h.b16 %v1300
    %v1618 = vunpack.c.l.b16 %v1301
    %v1619 = vunpack.c.h.b16 %v1301
    %v1620 = vunpack.c.l.b16 %v1302
    %v1621 = vunpack.c.h.b16 %v1302
    %v1622 = vunpack.c.l.b16 %v1303
    %v1623 = vunpack.c.h.b16 %v1303
    %v1624 = vunpack.c.l.b16 %v1304
    %v1625 = vunpack.c.h.b16 %v1304
    %v1626 = vunpack.c.l.b16 %v1305
    %v1627 = vunpack.c.h.b16 %v1305
    %v1628 = vunpack.c.l.b16 %v1306
    %v1629 = vunpack.c.h.b16 %v1306
    %v1630 = vunpack.c.l.b16 %v1307
    %v1631 = vunpack.c.h.b16 %v1307
    %v1632 = vunpack.c.l.b16 %v1308
    %v1633 = vunpack.c.h.b16 %v1308
    %v1634 = vunpack.c.l.b16 %v1309
    %v1635 = vunpack.c.h.b16 %v1309
    %v1636 = vunpack.c.l.b16 %v1310
    %v1637 = vunpack.c.h.b16 %v1310
    %v1638 = vunpack.c.l.b16 %v1311
    %v1639 = vunpack.c.h.b16 %v1311
    %v1640 = vunpack.c.l.b16 %v1312
    %v1641 = vunpack.c.h.b16 %v1312
    %v1642 = vunpack.c.l.b16 %v1313
    %v1643 = vunpack.c.h.b16 %v1313
    %v1644 = vunpack.c.l.b16 %v1314
    %v1645 = vunpack.c.h.b16 %v1314
    %v1646 = vunpack.c.l.b16 %v1315
    %v1647 = vunpack.c.h.b16 %v1315
    %v1648 = vunpack.c.l.b16 %v1316
    %v1649 = vunpack.c.h.b16 %v1316
    %v1650 = vunpack.c.l.b16 %v1317
    %v1651 = vunpack.c.h.b16 %v1317
    %v1652 = vunpack.c.l.b16 %v1318
    %v1653 = vunpack.c.h.b16 %v1318
    %v1654 = vunpack.c.l.b16 %v1319
    %v1655 = vunpack.c.h.b16 %v1319
    %v1656 = vunpack.c.l.b16 %v1320
    %v1657 = vunpack.c.h.b16 %v1320
    %v1658 = vunpack.c.l.b16 %v1321
    %v1659 = vunpack.c.h.b16 %v1321
    %v1660 = vunpack.c.l.b16 %v1322
    %v1661 = vunpack.c.h.b16 %v1322
    %v1662 = vunpack.c.l.b16 %v1323
    %v1663 = vunpack.c.h.b16 %v1323
    %v1664 = vunpack.c.l.b16 %v1324
    %v1665 = vunpack.c.h.b16 %v1324
    %v1666 = vunpack.c.l.b16 %v1325
    %v1667 = vunpack.c.h.b16 %v1325
    %v1668 = vunpack.c.l.b16 %v1326
    %v1669 = vunpack.c.h.b16 %v1326
    %v1670 = vunpack.c.l.b16 %v1327
    %v1671 = vunpack.c.h.b16 %v1327
    %v1672 = vunpack.c.l.b16 %v1328
    %v1673 = vunpack.c.h.b16 %v1328
    %v1674 = vunpack.c.l.b16 %v1329
    %v1675 = vunpack.c.h.b16 %v1329
    %v1676 = vunpack.c.l.b16 %v1330
    %v1677 = vunpack.c.h.b16 %v1330
    %v1678 = vunpack.c.l.b16 %v1331
    %v1679 = vunpack.c.h.b16 %v1331
    %v1680 = vunpack.c.l.b16 %v1332
    %v1681 = vunpack.c.h.b16 %v1332
    %v1682 = vunpack.c.l.b16 %v1333
    %v1683 = vunpack.c.h.b16 %v1333
    %v1684 = vunpack.c.l.b16 %v1334
    %v1685 = vunpack.c.h.b16 %v1334
    %v1686 = vunpack.c.l.b16 %v1335
    %v1687 = vunpack.c.h.b16 %v1335
    %v1688 = vunpack.c.l.b16 %v1336
    %v1689 = vunpack.c.h.b16 %v1336
    %v1690 = vunpack.c.l.b16 %v1337
    %v1691 = vunpack.c.h.b16 %v1337
    %v1692 = vunpack.c.l.b16 %v1338
    %v1693 = vunpack.c.h.b16 %v1338
    %v1694 = vunpack.c.l.b16 %v1339
    %v1695 = vunpack.c.h.b16 %v1339
    %v1696 = vunpack.c.l.b16 %v1340
    %v1697 = vunpack.c.h.b16 %v1340
    %v1698 = vunpack.c.l.b16 %v1341
    %v1699 = vunpack.c.h.b16 %v1341
    %v1700 = vunpack.c.l.b16 %v1342
    %v1701 = vunpack.c.h.b16 %v1342
    %v1702 = vunpack.c.l.b16 %v1343
    %v1703 = vunpack.c.h.b16 %v1343
    %v1704 = vunpack.c.l.b16 %v1344
    %v1705 = vunpack.c.h.b16 %v1344
    %v1706 = vunpack.c.l.b16 %v1345
    %v1707 = vunpack.c.h.b16 %v1345
    %v1708 = vunpack.c.l.b16 %v1346
    %v1709 = vunpack.c.h.b16 %v1346
    %v1710 = vunpack.c.l.b16 %v1347
    %v1711 = vunpack.c.h.b16 %v1347
    %v1712 = vunpack.c.l.b16 %v1348
    %v1713 = vunpack.c.h.b16 %v1348
    %v1714 = vunpack.c.l.b16 %v1349
    %v1715 = vunpack.c.h.b16 %v1349
    %v1716 = vunpack.c.l.b16 %v1350
    %v1717 = vunpack.c.h.b16 %v1350
    %v1718 = vunpack.c.l.b16 %v1351
    %v1719 = vunpack.c.h.b16 %v1351
    %v1720 = vunpack.c.l.b16 %v1352
    %v1721 = vunpack.c.h.b16 %v1352
    %v1722 = vunpack.c.l.b16 %v1353
    %v1723 = vunpack.c.h.b16 %v1353
    %v1724 = vunpack.c.l.b16 %v1354
    %v1725 = vunpack.c.h.b16 %v1354
    %v1726 = vunpack.c.l.b16 %v1355
    %v1727 = vunpack.c.h.b16 %v1355
    %v1728 = vunpack.c.l.b16 %v1356
    %v1729 = vunpack.c.h.b16 %v1356
    %v1730 = vunpack.c.l.b16 %v1357
    %v1731 = vunpack.c.h.b16 %v1357
    %v1732 = vunpack.c.l.b16 %v1358
    %v1733 = vunpack.c.h.b16 %v1358
    %v1734 = vunpack.c.l.b16 %v1359
    %v1735 = vunpack.c.h.b16 %v1359
    %v1736 = vunpack.c.l.b16 %v1360
    %v1737 = vunpack.c.h.b16 %v1360
    %v1738 = vunpack.c.l.b16 %v1361
    %v1739 = vunpack.c.h.b16 %v1361
    %v1740 = vunpack.c.l.b16 %v1362
    %v1741 = vunpack.c.h.b16 %v1362
    %v1742 = vunpack.c.l.b16 %v1363
    %v1743 = vunpack.c.h.b16 %v1363
    %v1744 = vunpack.c.l.b16 %v1364
    %v1745 = vunpack.c.h.b16 %v1364
    %v1746 = vunpack.c.l.b16 %v1365
    %v1747 = vunpack.c.h.b16 %v1365
    %v1748 = vunpack.c.l.b16 %v1366
    %v1749 = vunpack.c.h.b16 %v1366
    %v1750 = vunpack.c.l.b16 %v1367
    %v1751 = vunpack.c.h.b16 %v1367
    %v1752 = vunpack.c.l.b16 %v1368
    %v1753 = vunpack.c.h.b16 %v1368
    %v1754 = vunpack.c.l.b16 %v1369
    %v1755 = vunpack.c.h.b16 %v1369
    %v1756 = vunpack.c.l.b16 %v1370
    %v1757 = vunpack.c.h.b16 %v1370
    %v1758 = vunpack.c.l.b16 %v1371
    %v1759 = vunpack.c.h.b16 %v1371
    %v1760 = vunpack.c.l.b16 %v1372
    %v1761 = vunpack.c.h.b16 %v1372
    %v1762 = vunpack.c.l.b16 %v1373
    %v1763 = vunpack.c.h.b16 %v1373
    %v1764 = vunpack.c.l.b16 %v1374
    %v1765 = vunpack.c.h.b16 %v1374
    %v1766 = vunpack.c.l.b16 %v1375
    %v1767 = vunpack.c.h.b16 %v1375
    %v1768 = vunpack.c.l.b16 %v1376
    %v1769 = vunpack.c.h.b16 %v1376
    %v1770 = vunpack.c.l.b16 %v1377
    %v1771 = vunpack.c.h.b16 %v1377
    %v1772 = vunpack.c.l.b16 %v1378
    %v1773 = vunpack.c.h.b16 %v1378
    %v1774 = vunpack.c.l.b16 %v1379
    %v1775 = vunpack.c.h.b16 %v1379
    %v1776 = vunpack.c.l.b16 %v1380
    %v1777 = vunpack.c.h.b16 %v1380
    %v1778 = vunpack.c.l.b16 %v1381
    %v1779 = vunpack.c.h.b16 %v1381
    %v1780 = vunpack.c.l.b16 %v1382
    %v1781 = vunpack.c.h.b16 %v1382
    %v1782 = vunpack.c.l.b16 %v1383
    %v1783 = vunpack.c.h.b16 %v1383
    %v1784 = vunpack.c.l.b16 %v1384
    %v1785 = vunpack.c.h.b16 %v1384
    %v1786 = vunpack.c.l.b16 %v1385
    %v1787 = vunpack.c.h.b16 %v1385
    %v1788 = vunpack.c.l.b16 %v1386
    %v1789 = vunpack.c.h.b16 %v1386
    %v1790 = vunpack.c.l.b16 %v1387
    %v1791 = vunpack.c.h.b16 %v1387
    %v1792 = vunpack.c.l.b16 %v1388
    %v1793 = vunpack.c.h.b16 %v1388
    %v1794 = vunpack.c.l.b16 %v1389
    %v1795 = vunpack.c.h.b16 %v1389
    %v1796 = vpack.c.b16 %v1544, %v1540
    %v1797 = vpack.c.b16 %v1545, %v1541
    %v1798 = vpack.c.b16 %v1546, %v1542
    %v1799 = vpack.c.b16 %v1547, %v1543
    %v1800 = vpack.c.b16 %v1552, %v1548
    %v1801 = vpack.c.b16 %v1553, %v1549
    %v1802 = vpack.c.b16 %v1554, %v1550
    %v1803 = vpack.c.b16 %v1555, %v1551
    %v1804 = vpack.c.b16 %v1560, %v1556
    %v1805 = vpack.c.b16 %v1561, %v1557
    %v1806 = vpack.c.b16 %v1562, %v1558
    %v1807 = vpack.c.b16 %v1563, %v1559
    %v1808 = vpack.c.b16 %v1568, %v1564
    %v1809 = vpack.c.b16 %v1569, %v1565
    %v1810 = vpack.c.b16 %v1570, %v1566
    %v1811 = vpack.c.b16 %v1571, %v1567
    %v1812 = vpack.c.b16 %v1576, %v1572
    %v1813 = vpack.c.b16 %v1577, %v1573
    %v1814 = vpack.c.b16 %v1578, %v1574
    %v1815 = vpack.c.b16 %v1579, %v1575
    %v1816 = vpack.c.b16 %v1584, %v1580
    %v1817 = vpack.c.b16 %v1585, %v1581
    %v1818 = vpack.c.b16 %v1586, %v1582
    %v1819 = vpack.c.b16 %v1587, %v1583
    %v1820 = vpack.c.b16 %v1592, %v1588
    %v1821 = vpack.c.b16 %v1593, %v1589
    %v1822 = vpack.c.b16 %v1594, %v1590
    %v1823 = vpack.c.b16 %v1595, %v1591
    %v1824 = vpack.c.b16 %v1600, %v1596
    %v1825 = vpack.c.b16 %v1601, %v1597
    %v1826 = vpack.c.b16 %v1602, %v1598
    %v1827 = vpack.c.b16 %v1603, %v1599
    %v1828 = vpack.c.b16 %v1608, %v1604
    %v1829 = vpack.c.b16 %v1609, %v1605
    %v1830 = vpack.c.b16 %v1610, %v1606
    %v1831 = vpack.c.b16 %v1611, %v1607
    %v1832 = vpack.c.b16 %v1616, %v1612
    %v1833 = vpack.c.b16 %v1617, %v1613
    %v1834 = vpack.c.b16 %v1618, %v1614
    %v1835 = vpack.c.b16 %v1619, %v1615
    %v1836 = vpack.c.b16 %v1624, %v1620
    %v1837 = vpack.c.b16 %v1625, %v1621
    %v1838 = vpack.c.b16 %v1626, %v1622
    %v1839 = vpack.c.b16 %v1627, %v1623
    %v1840 = vpack.c.b16 %v1632, %v1628
    %v1841 = vpack.c.b16 %v1633, %v1629
    %v1842 = vpack.c.b16 %v1634, %v1630
    %v1843 = vpack.c.b16 %v1635, %v1631
    %v1844 = vpack.c.b16 %v1640, %v1636
    %v1845 = vpack.c.b16 %v1641, %v1637
    %v1846 = vpack.c.b16 %v1642, %v1638
    %v1847 = vpack.c.b16 %v1643, %v1639
    %v1848 = vpack.c.b16 %v1648, %v1644
    %v1849 = vpack.c.b16 %v1649, %v1645
    %v1850 = vpack.c.b16 %v1650, %v1646
    %v1851 = vpack.c.b16 %v1651, %v1647
    %v1852 = vpack.c.b16 %v1656, %v1652
    %v1853 = vpack.c.b16 %v1657, %v1653
    %v1854 = vpack.c.b16 %v1658, %v1654
    %v1855 = vpack.c.b16 %v1659, %v1655
    %v1856 = vpack.c.b16 %v1664, %v1660
    %v1857 = vpack.c.b16 %v1665, %v1661
    %v1858 = vpack.c.b16 %v1666, %v1662
    %v1859 = vpack.c.b16 %v1667, %v1663
    %v1860 = vpack.c.b16 %v1672, %v1668
    %v1861 = vpack.c.b16 %v1673, %v1669
    %v1862 = vpack.c.b16 %v1674, %v1670
    %v1863 = vpack.c.b16 %v1675, %v1671
    %v1864 = vpack.c.b16 %v1680, %v1676
    %v1865 = vpack.c.b16 %v1681, %v1677
    %v1866 = vpack.c.b16 %v1682, %v1678
    %v1867 = vpack.c.b16 %v1683, %v1679
    %v1868 = vpack.c.b16 %v1688, %v1684
    %v1869 = vpack.c.b16 %v1689, %v1685
    %v1870 = vpack.c.b16 %v1690, %v1686
    %v1871 = vpack.c.b16 %v1691, %v1687
    %v1872 = vpack.c.b16 %v1696, %v1692
    %v1873 = vpack.c.b16 %v1697, %v1693
    %v1874 = vpack.c.b16 %v1698, %v1694
    %v1875 = vpack.c.b16 %v1699, %v1695
    %v1876 = vpack.c.b16 %v1704, %v1700
    %v1877 = vpack.c.b16 %v1705, %v1701
    %v1878 = vpack.c.b16 %v1706, %v1702
    %v1879 = vpack.c.b16 %v1707, %v1703
    %v1880 = vpack.c.b16 %v1712, %v1708
    %v1881 = vpack.c.b16 %v1713, %v1709
    %v1882 = vpack.c.b16 %v1714, %v1710
    %v1883 = vpack.c.b16 %v1715, %v1711
    %v1884 = vpack.c.b16 %v1720, %v1716
    %v1885 = vpack.c.b16 %v1721, %v1717
    %v1886 = vpack.c.b16 %v1722, %v1718
    %v1887 = vpack.c.b16 %v1723, %v1719
    %v1888 = vpack.c.b16 %v1728, %v1724
    %v1889 = vpack.c.b16 %v1729, %v1725
    %v1890 = vpack.c.b16 %v1730, %v1726
    %v1891 = vpack.c.b16 %v1731, %v1727
    %v1892 = vpack.c.b16 %v1736, %v1732
    %v1893 = vpack.c.b16 %v1737, %v1733
    %v1894 = vpack.c.b16 %v1738, %v1734
    %v1895 = vpack.c.b16 %v1739, %v1735
    %v1896 = vpack.c.b16 %v1744, %v1740
    %v1897 = vpack.c.b16 %v1745, %v1741
    %v1898 = vpack.c.b16 %v1746, %v1742
    %v1899 = vpack.c.b16 %v1747, %v1743
    %v1900 = vpack.c.b16 %v1752, %v1748
    %v1901 = vpack.c.b16 %v1753, %v1749
    %v1902 = vpack.c.b16 %v1754, %v1750
    %v1903 = vpack.c.b16 %v1755, %v1751
    %v1904 = vpack.c.b16 %v1760, %v1756
    %v1905 = vpack.c.b16 %v1761, %v1757
    %v1906 = vpack.c.b16 %v1762, %v1758
    %v1907 = vpack.c.b16 %v1763, %v1759
    %v1908 = vpack.c.b16 %v1768, %v1764
    %v1909 = vpack.c.b16 %v1769, %v1765
    %v1910 = vpack.c.b16 %v1770, %v1766
    %v1911 = vpack.c.b16 %v1771, %v1767
    %v1912 = vpack.c.b16 %v1776, %v1772
    %v1913 = vpack.c.b16 %v1777, %v1773
    %v1914 = vpack.c.b16 %v1778, %v1774
    %v1915 = vpack.c.b16 %v1779, %v1775
    %v1916 = vpack.c.b16 %v1784, %v1780
    %v1917 = vpack.c.b16 %v1785, %v1781
    %v1918 = vpack.c.b16 %v1786, %v1782
    %v1919 = vpack.c.b16 %v1787, %v1783
    %v1920 = vpack.c.b16 %v1792, %v1788
    %v1921 = vpack.c.b16 %v1793, %v1789
    %v1922 = vpack.c.b16 %v1794, %v1790
    %v1923 = vpack.c.b16 %v1795, %v1791
    %2052 = vmatprep.subr.bf16.mxu0 %v1825
    %2053 = vmatpush1.bf16.msra.mxu0 %v1824
    %2054 = vmatprep.subr.bf16.mxu0 %v1821
    %2055 = vmatpush1.bf16.msra.mxu0 %v1820
    %2056 = vmatprep.subr.bf16.mxu0 %v1817
    %2057 = vmatpush1.bf16.msra.mxu0 %v1816
    %2058 = vmatprep.subr.bf16.mxu0 %v1813
    %2059 = vmatpush1.bf16.msra.mxu0 %v1812
    %2060 = vmatprep.subr.bf16.mxu0 %v1809
    %2061 = vmatpush1.bf16.msra.mxu0 %v1808
    %2062 = vmatprep.subr.bf16.mxu0 %v1805
    %2063 = vmatpush1.bf16.msra.mxu0 %v1804
    %2064 = vmatprep.subr.bf16.mxu0 %v1801
    %2065 = vmatpush1.bf16.msra.mxu0 %v1800
    %2066 = vmatprep.subr.bf16.mxu0 %v1797
    %2067 = vmatpush1.bf16.msra.mxu0 %v1796
    %2068 = vmatprep.subr.bf16.mxu0 %v1857
    %2069 = vmatpush2.bf16.msra.mxu0 %v1856
    %2070 = vmatprep.subr.bf16.mxu0 %v1853
    %2071 = vmatpush2.bf16.msra.mxu0 %v1852
    %2072 = vmatprep.subr.bf16.mxu0 %v1849
    %2073 = vmatpush2.bf16.msra.mxu0 %v1848
    %2074 = vmatprep.subr.bf16.mxu0 %v1845
    %2075 = vmatpush2.bf16.msra.mxu0 %v1844
    %2076 = vmatprep.subr.bf16.mxu0 %v1841
    %2077 = vmatpush2.bf16.msra.mxu0 %v1840
    %2078 = vmatprep.subr.bf16.mxu0 %v1837
    %2079 = vmatpush2.bf16.msra.mxu0 %v1836
    %2080 = vmatprep.subr.bf16.mxu0 %v1833
    %2081 = vmatpush2.bf16.msra.mxu0 %v1832
    %2082 = vmatprep.subr.bf16.mxu0 %v1829
    %2083 = vmatpush2.bf16.msra.mxu0 %v1828
    %2084 = vmatprep.mubr.bf16.mxu0 %v1259
    %2085 = vmatmul.mubr.bf16.gmra.mxu0 %v1258
    %v2086 = vpop.f32.mrf.mxu0
    %v2087 = vadd.f32 %v1395, %v2086
    %v2088 = vpop.f32.mrf.mxu0
    %v2089 = vadd.f32 %v1399, %v2088
    %v2090 = vpop.f32.mrf.mxu0
    %v2091 = vpop.f32.mrf.mxu0
    %2092 = vdwg.mxu0
    %2093 = vmatprep.subr.bf16.mxu0 %v1889
    %2094 = vmatpush1.bf16.msra.mxu0 %v1888
    %2095 = vmatprep.subr.bf16.mxu0 %v1885
    %2096 = vmatpush1.bf16.msra.mxu0 %v1884
    %2097 = vmatprep.subr.bf16.mxu0 %v1881
    %2098 = vmatpush1.bf16.msra.mxu0 %v1880
    %2099 = vmatprep.subr.bf16.mxu0 %v1877
    %2100 = vmatpush1.bf16.msra.mxu0 %v1876
    %2101 = vmatprep.subr.bf16.mxu0 %v1873
    %2102 = vmatpush1.bf16.msra.mxu0 %v1872
    %2103 = vmatprep.subr.bf16.mxu0 %v1869
    %2104 = vmatpush1.bf16.msra.mxu0 %v1868
    %2105 = vmatprep.subr.bf16.mxu0 %v1865
    %2106 = vmatpush1.bf16.msra.mxu0 %v1864
    %2107 = vmatprep.subr.bf16.mxu0 %v1861
    %2108 = vmatpush1.bf16.msra.mxu0 %v1860
    %2109 = vmatprep.subr.bf16.mxu0 %v1921
    %2110 = vmatpush2.bf16.msra.mxu0 %v1920
    %2111 = vmatprep.subr.bf16.mxu0 %v1917
    %2112 = vmatpush2.bf16.msra.mxu0 %v1916
    %2113 = vmatprep.subr.bf16.mxu0 %v1913
    %2114 = vmatpush2.bf16.msra.mxu0 %v1912
    %2115 = vmatprep.subr.bf16.mxu0 %v1909
    %2116 = vmatpush2.bf16.msra.mxu0 %v1908
    %2117 = vmatprep.subr.bf16.mxu0 %v1905
    %2118 = vmatpush2.bf16.msra.mxu0 %v1904
    %2119 = vmatprep.subr.bf16.mxu0 %v1901
    %2120 = vmatpush2.bf16.msra.mxu0 %v1900
    %2121 = vmatprep.subr.bf16.mxu0 %v1897
    %2122 = vmatpush2.bf16.msra.mxu0 %v1896
    %2123 = vmatprep.subr.bf16.mxu0 %v1893
    %2124 = vmatpush2.bf16.msra.mxu0 %v1892
    %2125 = vmatprep.mubr.bf16.mxu0 %v1261
    %2126 = vmatmul.mubr.bf16.gmra.mxu0 %v1260
    %v2127 = vpop.f32.mrf.mxu0
    %v2128 = vadd.f32 %v2087, %v2127
    %v2129 = vpop.f32.mrf.mxu0
    %v2130 = vadd.f32 %v2089, %v2129
    %v2131 = vpop.f32.mrf.mxu0
    %v2132 = vpop.f32.mrf.mxu0
    %2133 = vdwg.mxu0
    %2134 = vmatprep.subr.bf16.mxu0 %v1827
    %2135 = vmatpush1.bf16.msra.mxu0 %v1826
    %2136 = vmatprep.subr.bf16.mxu0 %v1823
    %2137 = vmatpush1.bf16.msra.mxu0 %v1822
    %2138 = vmatprep.subr.bf16.mxu0 %v1819
    %2139 = vmatpush1.bf16.msra.mxu0 %v1818
    %2140 = vmatprep.subr.bf16.mxu0 %v1815
    %2141 = vmatpush1.bf16.msra.mxu0 %v1814
    %2142 = vmatprep.subr.bf16.mxu0 %v1811
    %2143 = vmatpush1.bf16.msra.mxu0 %v1810
    %2144 = vmatprep.subr.bf16.mxu0 %v1807
    %2145 = vmatpush1.bf16.msra.mxu0 %v1806
    %2146 = vmatprep.subr.bf16.mxu0 %v1803
    %2147 = vmatpush1.bf16.msra.mxu0 %v1802
    %2148 = vmatprep.subr.bf16.mxu0 %v1799
    %2149 = vmatpush1.bf16.msra.mxu0 %v1798
    %2150 = vmatprep.subr.bf16.mxu0 %v1859
    %2151 = vmatpush2.bf16.msra.mxu0 %v1858
    %2152 = vmatprep.subr.bf16.mxu0 %v1855
    %2153 = vmatpush2.bf16.msra.mxu0 %v1854
    %2154 = vmatprep.subr.bf16.mxu0 %v1851
    %2155 = vmatpush2.bf16.msra.mxu0 %v1850
    %2156 = vmatprep.subr.bf16.mxu0 %v1847
    %2157 = vmatpush2.bf16.msra.mxu0 %v1846
    %2158 = vmatprep.subr.bf16.mxu0 %v1843
    %2159 = vmatpush2.bf16.msra.mxu0 %v1842
    %2160 = vmatprep.subr.bf16.mxu0 %v1839
    %2161 = vmatpush2.bf16.msra.mxu0 %v1838
    %2162 = vmatprep.subr.bf16.mxu0 %v1835
    %2163 = vmatpush2.bf16.msra.mxu0 %v1834
    %2164 = vmatprep.subr.bf16.mxu0 %v1831
    %2165 = vmatpush2.bf16.msra.mxu0 %v1830
    %2166 = vmatprep.mubr.bf16.mxu0 %v1259
    %2167 = vmatmul.mubr.bf16.gmra.mxu0 %v1258
    %v2168 = vpop.f32.mrf.mxu0
    %v2169 = vadd.f32 %v1403, %v2168
    %v2170 = vpop.f32.mrf.mxu0
    %v2171 = vadd.f32 %v1407, %v2170
    %v2172 = vpop.f32.mrf.mxu0
    %v2173 = vpop.f32.mrf.mxu0
    %2174 = vdwg.mxu0
    %2175 = vmatprep.subr.bf16.mxu0 %v1891
    %2176 = vmatpush1.bf16.msra.mxu0 %v1890
    %2177 = vmatprep.subr.bf16.mxu0 %v1887
    %2178 = vmatpush1.bf16.msra.mxu0 %v1886
    %2179 = vmatprep.subr.bf16.mxu0 %v1883
    %2180 = vmatpush1.bf16.msra.mxu0 %v1882
    %2181 = vmatprep.subr.bf16.mxu0 %v1879
    %2182 = vmatpush1.bf16.msra.mxu0 %v1878
    %2183 = vmatprep.subr.bf16.mxu0 %v1875
    %2184 = vmatpush1.bf16.msra.mxu0 %v1874
    %2185 = vmatprep.subr.bf16.mxu0 %v1871
    %2186 = vmatpush1.bf16.msra.mxu0 %v1870
    %2187 = vmatprep.subr.bf16.mxu0 %v1867
    %2188 = vmatpush1.bf16.msra.mxu0 %v1866
    %2189 = vmatprep.subr.bf16.mxu0 %v1863
    %2190 = vmatpush1.bf16.msra.mxu0 %v1862
    %2191 = vmatprep.subr.bf16.mxu0 %v1923
    %2192 = vmatpush2.bf16.msra.mxu0 %v1922
    %2193 = vmatprep.subr.bf16.mxu0 %v1919
    %2194 = vmatpush2.bf16.msra.mxu0 %v1918
    %2195 = vmatprep.subr.bf16.mxu0 %v1915
    %2196 = vmatpush2.bf16.msra.mxu0 %v1914
    %2197 = vmatprep.subr.bf16.mxu0 %v1911
    %2198 = vmatpush2.bf16.msra.mxu0 %v1910
    %2199 = vmatprep.subr.bf16.mxu0 %v1907
    %2200 = vmatpush2.bf16.msra.mxu0 %v1906
    %2201 = vmatprep.subr.bf16.mxu0 %v1903
    %2202 = vmatpush2.bf16.msra.mxu0 %v1902
    %2203 = vmatprep.subr.bf16.mxu0 %v1899
    %2204 = vmatpush2.bf16.msra.mxu0 %v1898
    %2205 = vmatprep.subr.bf16.mxu0 %v1895
    %2206 = vmatpush2.bf16.msra.mxu0 %v1894
    %2207 = vmatprep.mubr.bf16.mxu0 %v1261
    %2208 = vmatmul.mubr.bf16.gmra.mxu0 %v1260
    %v2209 = vpop.f32.mrf.mxu0
    %v2210 = vadd.f32 %v2169, %v2209
    %v2211 = vpop.f32.mrf.mxu0
    %v2212 = vadd.f32 %v2171, %v2211
    %v2213 = vpop.f32.mrf.mxu0
    %v2214 = vpop.f32.mrf.mxu0
    %2215 = vdwg.mxu0
    %v2216 = vmax.f32 %v2128, 0.0
    %v2217 = vmax.f32 %v2130, 0.0
    %v2218 = vmax.f32 %v2210, 0.0
    %v2219 = vmax.f32 %v2212, 0.0
    %v2220 = vld [vmem:[#allocation10] sm:$0xf]
    %v2222 = vlaneseq
    %v2223 = vshrl.u32 %v2222, 7
    %v2224 = vsub.s32 0, %v2223
    %v2225 = vrot.slane %v2220, %v2224
    %v2226 = vlaneseq
    %v2227 = vshrl.u32 %v2226, 7
    %v2228 = vsub.s32 1, %v2227
    %v2229 = vrot.slane %v2220, %v2228
    %v2230 = vlaneseq
    %v2231 = vshrl.u32 %v2230, 7
    %v2232 = vsub.s32 2, %v2231
    %v2233 = vrot.slane %v2220, %v2232
    %v2234 = vlaneseq
    %v2235 = vshrl.u32 %v2234, 7
    %v2236 = vsub.s32 3, %v2235
    %v2237 = vrot.slane %v2220, %v2236
    %v2242 = vmul.f32 %v2216, %v2225
    %v2243 = vmul.f32 %v2217, %v2229
    %v2244 = vmul.f32 %v2218, %v2233
    %v2245 = vmul.f32 %v2219, %v2237
    %v2246 = vadd.f32 %v2242, %v2243
    %v2247 = vadd.f32 %v2246, %v2244
    %v2248 = vadd.f32 %v2247, %v2245
    %2249 = vadd.xlane.f32.xlu0 %v2248
    %v2250 = vpop.xlane.xlu0 %2249
    %v2251 = vld [vmem:[#allocation2] sm:$0x1]
    %v2253 = vlaneseq
    %v2254 = vshrl.u32 %v2253, 7
    %v2255 = vsub.s32 0, %v2254
    %v2256 = vrot.slane %v2251, %v2255
    %v2258 = vadd.f32 %v2250, %v2256
    %v2259 = vsub.f32 0.0, %v2258
    %v2260 = vmul.f32 %v2259, 1.442695
    %v2261 = vpow.pop %v2260
    %v2262 = vadd.f32 %v2261, 1.0
    %v2263 = vrcp.pop %v2262
    %vm2264 = vcmask 7168
    %2265 = vst.msk [vmem:[%s9] sm:$0xff] %vm2264, %v2263
    // Predicated region
    $region58: #{tpu_custom_call.1} parent=1 // pred_check
      _
    $region59: #{tpu_custom_call.1} parent=1 // pred_check_branch
      %2267 = sbr.rel (0) target = $region61
    $region60: #{tpu_custom_call.1} parent=1 // pred_region
      _
    $region61: #{tpu_custom_call.1} parent=1 // pred_fallthru
      _
    // Predicated region
    $region62: #{tpu_custom_call.1} parent=1 // pred_check
      _
    $region63: #{tpu_custom_call.1} parent=1 // pred_check_branch
      %2269 = sbr.rel (0) target = $region65
    $region64: #{tpu_custom_call.1} parent=1 // pred_region
      _
    $region65: #{tpu_custom_call.1} parent=1 // pred_fallthru
      _
    %2270 = vsyncpa [#allocation4], 1
    %2271 = vsyncpa [#allocation6], 1
    %2272 = vsyncpa [#allocation9], 1

</llo_original>
